<compile_context>
chip_gen: v7x
topology: tpu7x:2x2x1
jax: 0.10.0
libtpu: 0.0.40
codegen_flags: <defaults>
</compile_context>

<pallas_src>
import jax
import jax.numpy as jnp
from jax.experimental import pallas as pl
from jax.experimental.pallas import tpu as pltpu

# ---- model dimensions (deterministic synthetic config) ----
N_BINS = 8          # decoder.n_bins
H_IMG = W_IMG = 8   # image spatial size
C_IMG = 1
N_PIXELS = C_IMG * H_IMG * W_IMG   # decoder.n_pixels = 64
N_LATENT = 16                      # encoder.n_latent
HIDDEN = 32
BATCH = 256                        # small overall batch, still > B_TILE -> 2 grid steps
B_TILE = 128                       # batch tile per grid step (MXU M-dim = 128)


def cat_vae_fwd_kernel(x_ref, eps_ref,
                       w1_ref, b1_ref, wmlv_ref, bmlv_ref,
                       w2_ref, b2_ref, w3_ref, b3_ref,
                       out_ref):
    # x_cat = floor(x * (n_bins - 1))   (CategoricalVAE.forward quantization, f32)
    x_cat = jnp.floor(x_ref[...] * (N_BINS - 1))

    # ---- GaussianEncoder ----  (bf16 MXU operands, f32 accumulation)
    h = jnp.dot(x_cat.astype(jnp.bfloat16), w1_ref[...],
                preferred_element_type=jnp.float32) + b1_ref[...]
    h = jnp.maximum(h, 0.0)

    # fused mu|logvar head: one (HIDDEN, 2*N_LATENT) matmul, static slices afterwards
    mlv = jnp.dot(h.astype(jnp.bfloat16), wmlv_ref[...],
                  preferred_element_type=jnp.float32) + bmlv_ref[...]
    mu = mlv[:, :N_LATENT]
    logvar = mlv[:, N_LATENT:]
    # reparameterization: z = mu + sigma * eps   (eps supplied for determinism, f32)
    z = mu + jnp.exp(0.5 * logvar) * eps_ref[...]

    # ---- CategoricalDecoder ----
    hd = jnp.dot(z.astype(jnp.bfloat16), w2_ref[...],
                 preferred_element_type=jnp.float32) + b2_ref[...]
    hd = jnp.maximum(hd, 0.0)
    # logits: (B_TILE, N_BINS*N_PIXELS), bins-major -> lane-dense, no 3D reshape needed
    logits = jnp.dot(hd.astype(jnp.bfloat16), w3_ref[...],
                     preferred_element_type=jnp.float32) + b3_ref[...]

    # softmax over bins via static contiguous lane slices (pure VPU/EUP work, f32)
    slices = [logits[:, k * N_PIXELS:(k + 1) * N_PIXELS] for k in range(N_BINS)]
    m = slices[0]
    for k in range(1, N_BINS):
        m = jnp.maximum(m, slices[k])
    es = [jnp.exp(s - m) for s in slices]
    denom = es[0]
    for k in range(1, N_BINS):
        denom = denom + es[k]
    # Exact inverse (one f32 divide per tile).  The previous approx=True EUP reciprocal
    # had too much relative error for the pmf to sum to 1 within tolerance.
    inv = 1.0 / denom
    pmf = jnp.concatenate([e * inv for e in es], axis=-1)   # (B_TILE, 512) bins-major

    out_ref[...] = pmf.astype(out_ref.dtype)


def _full_spec(shape):
    # whole-array block, grid-invariant (same block index every step -> DMA'd once)
    return pl.BlockSpec(shape, lambda i: tuple(0 for _ in shape))


def categorical_vae_forward(x_img, eps, params):
    """x_img: (B, C, H, W) float32 in [0, 1); eps: (B, n_latent).
    Returns pmf (B, n_pixels, n_bins)."""
    B = x_img.shape[0]
    assert B % B_TILE == 0
    x = x_img.reshape(B, N_PIXELS).astype(jnp.float32)
    (w1, b1, wmlv, bmlv, w2, b2, w3, b3) = params

    grid = (B // B_TILE,)
    in_specs = [
        pl.BlockSpec((B_TILE, N_PIXELS), lambda i: (i, 0)),     # x   (batch-tiled)
        pl.BlockSpec((B_TILE, N_LATENT), lambda i: (i, 0)),     # eps (batch-tiled)
        _full_spec(w1.shape), _full_spec(b1.shape),
        _full_spec(wmlv.shape), _full_spec(bmlv.shape),
        _full_spec(w2.shape), _full_spec(b2.shape),
        _full_spec(w3.shape), _full_spec(b3.shape),
    ]
    # lane-dense flat output: last dim 512 = 4 * 128 -> unmasked full-vreg stores
    out_spec = pl.BlockSpec((B_TILE, N_BINS * N_PIXELS), lambda i: (i, 0))

    pmf_flat = pl.pallas_call(
        cat_vae_fwd_kernel,
        out_shape=jax.ShapeDtypeStruct((B, N_BINS * N_PIXELS), jnp.float32),
        grid_spec=pltpu.PrefetchScalarGridSpec(
            num_scalar_prefetch=0,
            grid=grid,
            in_specs=in_specs,
            out_specs=out_spec,
        ),
        compiler_params=pltpu.CompilerParams(
            dimension_semantics=("parallel",)),
    )(x, eps, w1, b1, wmlv, bmlv, w2, b2, w3, b3)

    # bins-major flat (B, n_bins*n_pixels) -> (B, n_pixels, n_bins) in plain JAX (cheap)
    return pmf_flat.reshape(B, N_BINS, N_PIXELS).transpose(0, 2, 1)


def init_params(key):
    ks = jax.random.split(key, 5)
    s = 0.1
    # weights stored in bf16 (MXU-native on v5e/v6e/v7x); biases stay f32
    w1 = (s * jax.random.normal(ks[0], (N_PIXELS, HIDDEN), jnp.float32)).astype(jnp.bfloat16)
    b1 = jnp.zeros((1, HIDDEN), jnp.float32)
    # fused mu|logvar head: (HIDDEN, 2*N_LATENT)
    wmu = s * jax.random.normal(ks[1], (HIDDEN, N_LATENT), jnp.float32)
    wlv = s * jax.random.normal(ks[2], (HIDDEN, N_LATENT), jnp.float32)
    wmlv = jnp.concatenate([wmu, wlv], axis=1).astype(jnp.bfloat16)
    bmlv = jnp.zeros((1, 2 * N_LATENT), jnp.float32)
    w2 = (s * jax.random.normal(ks[3], (N_LATENT, HIDDEN), jnp.float32)).astype(jnp.bfloat16)
    b2 = jnp.zeros((1, HIDDEN), jnp.float32)
    # decoder head generated in PyTorch-conventional pixel-major (HIDDEN, n_pixels, n_bins)
    # layout, then permuted once at init to bins-major columns for the kernel.
    w3_pix_major = s * jax.random.normal(ks[4], (HIDDEN, N_PIXELS, N_BINS), jnp.float32)
    w3 = jnp.transpose(w3_pix_major, (0, 2, 1)).reshape(
        HIDDEN, N_BINS * N_PIXELS).astype(jnp.bfloat16)
    b3 = jnp.zeros((1, N_BINS * N_PIXELS), jnp.float32)
    return (w1, b1, wmlv, bmlv, w2, b2, w3, b3)


def reference_forward(x_img, eps, params):
    """Pure-JAX reference (same bf16-operand / f32-accumulate math as the kernel)."""
    B = x_img.shape[0]
    x = x_img.reshape(B, N_PIXELS).astype(jnp.float32)
    (w1, b1, wmlv, bmlv, w2, b2, w3, b3) = params
    x_cat = jnp.floor(x * (N_BINS - 1))
    h = jnp.maximum(jnp.dot(x_cat.astype(jnp.bfloat16), w1,
                            preferred_element_type=jnp.float32) + b1, 0.0)
    mlv = jnp.dot(h.astype(jnp.bfloat16), wmlv,
                  preferred_element_type=jnp.float32) + bmlv
    mu, logvar = mlv[:, :N_LATENT], mlv[:, N_LATENT:]
    z = mu + jnp.exp(0.5 * logvar) * eps
    hd = jnp.maximum(jnp.dot(z.astype(jnp.bfloat16), w2,
                             preferred_element_type=jnp.float32) + b2, 0.0)
    logits = jnp.dot(hd.astype(jnp.bfloat16), w3,
                     preferred_element_type=jnp.float32) + b3
    logits = logits.reshape(B, N_BINS, N_PIXELS).transpose(0, 2, 1)
    return jax.nn.softmax(logits, axis=-1)


if __name__ == "__main__":
    key = jax.random.PRNGKey(0)
    k_x, k_eps, k_p = jax.random.split(key, 3)

    # NCHW image input in [0, 1), as CategoricalVAE.forward expects
    x = jax.random.uniform(k_x, (BATCH, C_IMG, H_IMG, W_IMG), jnp.float32)
    eps = jax.random.normal(k_eps, (BATCH, N_LATENT), jnp.float32)
    params = init_params(k_p)

    pmf = categorical_vae_forward(x, eps, params)
    pmf = jax.block_until_ready(pmf)

    # sanity: output is a valid categorical pmf over bins per pixel
    assert pmf.shape == (BATCH, N_PIXELS, N_BINS)
    assert bool(jnp.all(jnp.isfinite(pmf)))
    sums = jnp.sum(pmf, axis=-1)
    assert bool(jnp.all(jnp.abs(sums - 1.0) < 2e-3))

    # correctness vs pure-JAX reference
    ref = reference_forward(x, eps, params)
    assert bool(jnp.all(jnp.abs(pmf - ref) < 5e-3))

    print("KERNEL_OK")
</pallas_src>

<mosaic_0001>
module attributes {stable_mosaic.version = 11 : i64} {
  func.func @cat_vae_fwd_kernel(%arg0: i32, %arg1: memref<128x64xf32, #tpu.memory_space<vmem>>, %arg2: memref<128x16xf32, #tpu.memory_space<vmem>>, %arg3: memref<64x32xbf16, #tpu.memory_space<vmem>>, %arg4: memref<1x32xf32, #tpu.memory_space<vmem>>, %arg5: memref<32x32xbf16, #tpu.memory_space<vmem>>, %arg6: memref<1x32xf32, #tpu.memory_space<vmem>>, %arg7: memref<16x32xbf16, #tpu.memory_space<vmem>>, %arg8: memref<1x32xf32, #tpu.memory_space<vmem>>, %arg9: memref<32x512xbf16, #tpu.memory_space<vmem>>, %arg10: memref<1x512xf32, #tpu.memory_space<vmem>>, %arg11: memref<128x512xf32, #tpu.memory_space<vmem>>) attributes {dimension_semantics = [#tpu.dimension_semantics<parallel>], iteration_bounds = array<i64: 2>, scalar_prefetch = 0 : i64, scratch_operands = 0 : i64, tpu.core_type = #tpu.core_type<tc>, window_params = [{transform_indices = @transform_0, window_bounds = array<i64: 128, 64>}, {transform_indices = @transform_1, window_bounds = array<i64: 128, 16>}, {pipeline_mode = #tpu.pipeline_mode<synchronous>, transform_indices = @transform_2, window_bounds = array<i64: 64, 32>}, {pipeline_mode = #tpu.pipeline_mode<synchronous>, transform_indices = @transform_3, window_bounds = array<i64: 1, 32>}, {pipeline_mode = #tpu.pipeline_mode<synchronous>, transform_indices = @transform_4, window_bounds = array<i64: 32, 32>}, {pipeline_mode = #tpu.pipeline_mode<synchronous>, transform_indices = @transform_5, window_bounds = array<i64: 1, 32>}, {pipeline_mode = #tpu.pipeline_mode<synchronous>, transform_indices = @transform_6, window_bounds = array<i64: 16, 32>}, {pipeline_mode = #tpu.pipeline_mode<synchronous>, transform_indices = @transform_7, window_bounds = array<i64: 1, 32>}, {pipeline_mode = #tpu.pipeline_mode<synchronous>, transform_indices = @transform_8, window_bounds = array<i64: 32, 512>}, {pipeline_mode = #tpu.pipeline_mode<synchronous>, transform_indices = @transform_9, window_bounds = array<i64: 1, 512>}, {transform_indices = @transform_10, window_bounds = array<i64: 128, 512>}]} {
    %c0 = arith.constant 0 : index
    %c0_0 = arith.constant 0 : index
    %0 = vector.load %arg1[%c0, %c0_0] : memref<128x64xf32, #tpu.memory_space<vmem>>, vector<128x64xf32>
    %cst = arith.constant 7.000000e+00 : f32
    %1 = vector.broadcast %cst : f32 to vector<128x64xf32>
    %2 = arith.mulf %0, %1 : vector<128x64xf32>
    %3 = math.floor %2 : vector<128x64xf32>
    %4 = arith.truncf %3 : vector<128x64xf32> to vector<128x64xbf16>
    %c0_1 = arith.constant 0 : index
    %c0_2 = arith.constant 0 : index
    %5 = vector.load %arg3[%c0_1, %c0_2] : memref<64x32xbf16, #tpu.memory_space<vmem>>, vector<64x32xbf16>
    %cst_3 = arith.constant dense<0.000000e+00> : vector<128x32xf32>
    %6 = tpu.matmul %4, %5, %cst_3 {dimension_numbers = #tpu.dot_dimension_numbers<[1], [0], [0], [1], [0, 0, 1, 1], [], []>} : vector<128x64xbf16>, vector<64x32xbf16>, vector<128x32xf32> -> vector<128x32xf32>
    %c0_4 = arith.constant 0 : index
    %c0_5 = arith.constant 0 : index
    %7 = vector.load %arg4[%c0_4, %c0_5] : memref<1x32xf32, #tpu.memory_space<vmem>>, vector<1x32xf32>
    %8 = vector.broadcast %7 : vector<1x32xf32> to vector<128x32xf32>
    %9 = arith.addf %6, %8 : vector<128x32xf32>
    %cst_6 = arith.constant 0.000000e+00 : f32
    %10 = vector.broadcast %cst_6 : f32 to vector<128x32xf32>
    %11 = arith.maximumf %9, %10 : vector<128x32xf32>
    %12 = arith.truncf %11 : vector<128x32xf32> to vector<128x32xbf16>
    %c0_7 = arith.constant 0 : index
    %c0_8 = arith.constant 0 : index
    %13 = vector.load %arg5[%c0_7, %c0_8] : memref<32x32xbf16, #tpu.memory_space<vmem>>, vector<32x32xbf16>
    %cst_9 = arith.constant dense<0.000000e+00> : vector<128x32xf32>
    %14 = tpu.matmul %12, %13, %cst_9 {dimension_numbers = #tpu.dot_dimension_numbers<[1], [0], [0], [1], [0, 0, 1, 1], [], []>} : vector<128x32xbf16>, vector<32x32xbf16>, vector<128x32xf32> -> vector<128x32xf32>
    %c0_10 = arith.constant 0 : index
    %c0_11 = arith.constant 0 : index
    %15 = vector.load %arg6[%c0_10, %c0_11] : memref<1x32xf32, #tpu.memory_space<vmem>>, vector<1x32xf32>
    %16 = vector.broadcast %15 : vector<1x32xf32> to vector<128x32xf32>
    %17 = arith.addf %14, %16 : vector<128x32xf32>
    %18 = vector.extract_strided_slice %17 {offsets = [0, 0], sizes = [128, 16], strides = [1, 1]} : vector<128x32xf32> to vector<128x16xf32>
    %19 = vector.extract_strided_slice %17 {offsets = [0, 16], sizes = [128, 16], strides = [1, 1]} : vector<128x32xf32> to vector<128x16xf32>
    %cst_12 = arith.constant 5.000000e-01 : f32
    %20 = vector.broadcast %cst_12 : f32 to vector<128x16xf32>
    %21 = arith.mulf %20, %19 : vector<128x16xf32>
    %22 = math.exp %21 : vector<128x16xf32>
    %c0_13 = arith.constant 0 : index
    %c0_14 = arith.constant 0 : index
    %23 = vector.load %arg2[%c0_13, %c0_14] : memref<128x16xf32, #tpu.memory_space<vmem>>, vector<128x16xf32>
    %24 = arith.mulf %22, %23 : vector<128x16xf32>
    %25 = arith.addf %18, %24 : vector<128x16xf32>
    %26 = arith.truncf %25 : vector<128x16xf32> to vector<128x16xbf16>
    %c0_15 = arith.constant 0 : index
    %c0_16 = arith.constant 0 : index
    %27 = vector.load %arg7[%c0_15, %c0_16] : memref<16x32xbf16, #tpu.memory_space<vmem>>, vector<16x32xbf16>
    %cst_17 = arith.constant dense<0.000000e+00> : vector<128x32xf32>
    %28 = tpu.matmul %26, %27, %cst_17 {dimension_numbers = #tpu.dot_dimension_numbers<[1], [0], [0], [1], [0, 0, 1, 1], [], []>} : vector<128x16xbf16>, vector<16x32xbf16>, vector<128x32xf32> -> vector<128x32xf32>
    %c0_18 = arith.constant 0 : index
    %c0_19 = arith.constant 0 : index
    %29 = vector.load %arg8[%c0_18, %c0_19] : memref<1x32xf32, #tpu.memory_space<vmem>>, vector<1x32xf32>
    %30 = vector.broadcast %29 : vector<1x32xf32> to vector<128x32xf32>
    %31 = arith.addf %28, %30 : vector<128x32xf32>
    %cst_20 = arith.constant 0.000000e+00 : f32
    %32 = vector.broadcast %cst_20 : f32 to vector<128x32xf32>
    %33 = arith.maximumf %31, %32 : vector<128x32xf32>
    %34 = arith.truncf %33 : vector<128x32xf32> to vector<128x32xbf16>
    %c0_21 = arith.constant 0 : index
    %c0_22 = arith.constant 0 : index
    %35 = vector.load %arg9[%c0_21, %c0_22] : memref<32x512xbf16, #tpu.memory_space<vmem>>, vector<32x512xbf16>
    %cst_23 = arith.constant dense<0.000000e+00> : vector<128x512xf32>
    %36 = tpu.matmul %34, %35, %cst_23 {dimension_numbers = #tpu.dot_dimension_numbers<[1], [0], [0], [1], [0, 0, 1, 1], [], []>} : vector<128x32xbf16>, vector<32x512xbf16>, vector<128x512xf32> -> vector<128x512xf32>
    %c0_24 = arith.constant 0 : index
    %c0_25 = arith.constant 0 : index
    %37 = vector.load %arg10[%c0_24, %c0_25] : memref<1x512xf32, #tpu.memory_space<vmem>>, vector<1x512xf32>
    %38 = vector.broadcast %37 : vector<1x512xf32> to vector<128x512xf32>
    %39 = arith.addf %36, %38 : vector<128x512xf32>
    %40 = vector.extract_strided_slice %39 {offsets = [0, 0], sizes = [128, 64], strides = [1, 1]} : vector<128x512xf32> to vector<128x64xf32>
    %41 = vector.extract_strided_slice %39 {offsets = [0, 64], sizes = [128, 64], strides = [1, 1]} : vector<128x512xf32> to vector<128x64xf32>
    %42 = vector.extract_strided_slice %39 {offsets = [0, 128], sizes = [128, 64], strides = [1, 1]} : vector<128x512xf32> to vector<128x64xf32>
    %43 = vector.extract_strided_slice %39 {offsets = [0, 192], sizes = [128, 64], strides = [1, 1]} : vector<128x512xf32> to vector<128x64xf32>
    %44 = vector.extract_strided_slice %39 {offsets = [0, 256], sizes = [128, 64], strides = [1, 1]} : vector<128x512xf32> to vector<128x64xf32>
    %45 = vector.extract_strided_slice %39 {offsets = [0, 320], sizes = [128, 64], strides = [1, 1]} : vector<128x512xf32> to vector<128x64xf32>
    %46 = vector.extract_strided_slice %39 {offsets = [0, 384], sizes = [128, 64], strides = [1, 1]} : vector<128x512xf32> to vector<128x64xf32>
    %47 = vector.extract_strided_slice %39 {offsets = [0, 448], sizes = [128, 64], strides = [1, 1]} : vector<128x512xf32> to vector<128x64xf32>
    %48 = arith.maximumf %40, %41 : vector<128x64xf32>
    %49 = arith.maximumf %48, %42 : vector<128x64xf32>
    %50 = arith.maximumf %49, %43 : vector<128x64xf32>
    %51 = arith.maximumf %50, %44 : vector<128x64xf32>
    %52 = arith.maximumf %51, %45 : vector<128x64xf32>
    %53 = arith.maximumf %52, %46 : vector<128x64xf32>
    %54 = arith.maximumf %53, %47 : vector<128x64xf32>
    %55 = arith.subf %40, %54 : vector<128x64xf32>
    %56 = math.exp %55 : vector<128x64xf32>
    %57 = arith.subf %41, %54 : vector<128x64xf32>
    %58 = math.exp %57 : vector<128x64xf32>
    %59 = arith.subf %42, %54 : vector<128x64xf32>
    %60 = math.exp %59 : vector<128x64xf32>
    %61 = arith.subf %43, %54 : vector<128x64xf32>
    %62 = math.exp %61 : vector<128x64xf32>
    %63 = arith.subf %44, %54 : vector<128x64xf32>
    %64 = math.exp %63 : vector<128x64xf32>
    %65 = arith.subf %45, %54 : vector<128x64xf32>
    %66 = math.exp %65 : vector<128x64xf32>
    %67 = arith.subf %46, %54 : vector<128x64xf32>
    %68 = math.exp %67 : vector<128x64xf32>
    %69 = arith.subf %47, %54 : vector<128x64xf32>
    %70 = math.exp %69 : vector<128x64xf32>
    %71 = arith.addf %56, %58 : vector<128x64xf32>
    %72 = arith.addf %71, %60 : vector<128x64xf32>
    %73 = arith.addf %72, %62 : vector<128x64xf32>
    %74 = arith.addf %73, %64 : vector<128x64xf32>
    %75 = arith.addf %74, %66 : vector<128x64xf32>
    %76 = arith.addf %75, %68 : vector<128x64xf32>
    %77 = arith.addf %76, %70 : vector<128x64xf32>
    %cst_26 = arith.constant 1.000000e+00 : f32
    %78 = vector.broadcast %cst_26 : f32 to vector<128x64xf32>
    %79 = arith.divf %78, %77 : vector<128x64xf32>
    %80 = arith.mulf %56, %79 : vector<128x64xf32>
    %81 = arith.mulf %58, %79 : vector<128x64xf32>
    %82 = arith.mulf %60, %79 : vector<128x64xf32>
    %83 = arith.mulf %62, %79 : vector<128x64xf32>
    %84 = arith.mulf %64, %79 : vector<128x64xf32>
    %85 = arith.mulf %66, %79 : vector<128x64xf32>
    %86 = arith.mulf %68, %79 : vector<128x64xf32>
    %87 = arith.mulf %70, %79 : vector<128x64xf32>
    %88 = tpu.concatenate %80, %81, %82, %83, %84, %85, %86, %87 in 1 : vector<128x64xf32>, vector<128x64xf32>, vector<128x64xf32>, vector<128x64xf32>, vector<128x64xf32>, vector<128x64xf32>, vector<128x64xf32>, vector<128x64xf32> -> vector<128x512xf32>
    %c0_27 = arith.constant 0 : index
    %c0_28 = arith.constant 0 : index
    %89 = vector.load %arg11[%c0_27, %c0_28] : memref<128x512xf32, #tpu.memory_space<vmem>>, vector<128x512xf32>
    tpu.vector_store %arg11[%c0_27, %c0_28], %88 {strides = array<i32>} : memref<128x512xf32, #tpu.memory_space<vmem>>, vector<128x512xf32>,
    return
  }
  func.func @transform_0(%arg0: i32) -> (i32, i32) {
    %c0_i32 = arith.constant 0 : i32
    %c0_i32_0 = arith.constant 0 : i32
    return %arg0, %c0_i32 : i32, i32
  }
  func.func @transform_1(%arg0: i32) -> (i32, i32) {
    %c0_i32 = arith.constant 0 : i32
    %c0_i32_0 = arith.constant 0 : i32
    return %arg0, %c0_i32 : i32, i32
  }
  func.func @transform_2(%arg0: i32) -> (i32, i32) {
    %c0_i32 = arith.constant 0 : i32
    %c0_i32_0 = arith.constant 0 : i32
    %c0_i32_1 = arith.constant 0 : i32
    return %c0_i32, %c0_i32_0 : i32, i32
  }
  func.func @transform_3(%arg0: i32) -> (i32, i32) {
    %c0_i32 = arith.constant 0 : i32
    %c0_i32_0 = arith.constant 0 : i32
    %c0_i32_1 = arith.constant 0 : i32
    return %c0_i32, %c0_i32_0 : i32, i32
  }
  func.func @transform_4(%arg0: i32) -> (i32, i32) {
    %c0_i32 = arith.constant 0 : i32
    %c0_i32_0 = arith.constant 0 : i32
    %c0_i32_1 = arith.constant 0 : i32
    return %c0_i32, %c0_i32_0 : i32, i32
  }
  func.func @transform_5(%arg0: i32) -> (i32, i32) {
    %c0_i32 = arith.constant 0 : i32
    %c0_i32_0 = arith.constant 0 : i32
    %c0_i32_1 = arith.constant 0 : i32
    return %c0_i32, %c0_i32_0 : i32, i32
  }
  func.func @transform_6(%arg0: i32) -> (i32, i32) {
    %c0_i32 = arith.constant 0 : i32
    %c0_i32_0 = arith.constant 0 : i32
    %c0_i32_1 = arith.constant 0 : i32
    return %c0_i32, %c0_i32_0 : i32, i32
  }
  func.func @transform_7(%arg0: i32) -> (i32, i32) {
    %c0_i32 = arith.constant 0 : i32
    %c0_i32_0 = arith.constant 0 : i32
    %c0_i32_1 = arith.constant 0 : i32
    return %c0_i32, %c0_i32_0 : i32, i32
  }
  func.func @transform_8(%arg0: i32) -> (i32, i32) {
    %c0_i32 = arith.constant 0 : i32
    %c0_i32_0 = arith.constant 0 : i32
    %c0_i32_1 = arith.constant 0 : i32
    return %c0_i32, %c0_i32_0 : i32, i32
  }
  func.func @transform_9(%arg0: i32) -> (i32, i32) {
    %c0_i32 = arith.constant 0 : i32
    %c0_i32_0 = arith.constant 0 : i32
    %c0_i32_1 = arith.constant 0 : i32
    return %c0_i32, %c0_i32_0 : i32, i32
  }
  func.func @transform_10(%arg0: i32) -> (i32, i32) {
    %c0_i32 = arith.constant 0 : i32
    %c0_i32_0 = arith.constant 0 : i32
    return %arg0, %c0_i32 : i32, i32
  }
}

</mosaic_0001>

<llo_original>
// kernel: tpu_custom_call.1
$region0: #{tpu_custom_call.1}
  #allocation0 [shape = 'u32[]', space=smem, size = 0x4, offset = 0x4, fixed_abs, tag = 'smem constant byte address 0x4 - core index']
  #allocation1 [shape = 'u32[144,128]{1,0:T(1,128)}', space=vmem, size = 0x12000, scoped, tag = 'internal scratch']
  %s0 = inlined_call_operand.vmem [shape: f32[256,64], index: 0, kind: input, shape index: {}]
  %s1 = inlined_call_operand.vmem [shape: f32[256,16], index: 1, kind: input, shape index: {}]
  %s2 = inlined_call_operand.vmem [shape: bf16[64,32], index: 2, kind: input, shape index: {}]
  %s3 = inlined_call_operand.vmem [shape: f32[1,32], index: 3, kind: input, shape index: {}]
  %s4 = inlined_call_operand.vmem [shape: bf16[32,32], index: 4, kind: input, shape index: {}]
  %s5 = inlined_call_operand.vmem [shape: f32[1,32], index: 5, kind: input, shape index: {}]
  %s6 = inlined_call_operand.vmem [shape: bf16[16,32], index: 6, kind: input, shape index: {}]
  %s7 = inlined_call_operand.vmem [shape: f32[1,32], index: 7, kind: input, shape index: {}]
  %s8 = inlined_call_operand.vmem [shape: bf16[32,512], index: 8, kind: input, shape index: {}]
  %s9 = inlined_call_operand.vmem [shape: f32[1,512], index: 9, kind: input, shape index: {}]
  %s10 = inlined_call_operand.hbm [shape: f32[256,512], index: 10, kind: output, shape index: {}]
  %s11 = sld [smem:[#allocation0]]
  $region73: #{tpu_custom_call.1} parent=0
    _
  %s13 = ssub.s32 1, %s11
  %s14 = scalar_select 0, %s13, %s11
  $region1: #{tpu_custom_call.1} parent=0
    #allocation2 [shape = 'u8[524288]{0}', space=vmem, size = 0x80000, scoped, tag = 'output window, operand 0']
    #allocation3 [shape = 's32[2]{0}', space=sflag, size = 0x8, scoped, tag = 'scoped memory for tpu_custom_call.1']
    %15 = vsyncpa [#allocation3], 0
    %s16 = scalar_lea.sflag [#allocation3], 1
    %17 = vsyncpa %s16, 0
    loop: start=0, step=1, limit=4
    $region2: #{tpu_custom_call.1} parent=1 // loop_pre_header
      _
    $region3: #{tpu_custom_call.1} parent=1 // loop_header
      %s19 = sphi 0, %s23
      %p20 = scmp.ge.s32.totalorder %s19, 4
      %s29 = sphi 0, %s31
      %s32 = sphi 0, %s29
      %s33 = sphi 0, %s32
      %s49 = sphi 0, %s33
      %s55 = sphi 0, %s57
      %s58 = sphi 0, %s55
      %s59 = sphi 0, %s58
      %s75 = sphi 0, %s59
      %s79 = sphi 0, %s79
      %s81 = sphi 0, %s79
      %s82 = sphi 0, %s81
      %s96 = sphi 0, %s82
      %s100 = sphi 0, %s100
      %s102 = sphi 0, %s100
      %s103 = sphi 0, %s102
      %s117 = sphi 0, %s103
      %s121 = sphi 0, %s121
      %s123 = sphi 0, %s121
      %s124 = sphi 0, %s123
      %s138 = sphi 0, %s124
      %s142 = sphi 0, %s142
      %s144 = sphi 0, %s142
      %s145 = sphi 0, %s144
      %s159 = sphi 0, %s145
      %s163 = sphi 0, %s163
      %s165 = sphi 0, %s163
      %s166 = sphi 0, %s165
      %s180 = sphi 0, %s166
      %s184 = sphi 0, %s184
      %s186 = sphi 0, %s184
      %s187 = sphi 0, %s186
      %s201 = sphi 0, %s187
      %s205 = sphi 0, %s205
      %s207 = sphi 0, %s205
      %s208 = sphi 0, %s207
      %s222 = sphi 0, %s208
      %s226 = sphi 0, %s226
      %s228 = sphi 0, %s226
      %s229 = sphi 0, %s228
      %s243 = sphi 0, %s229
      %s249 = sphi 0, %s251
      %s252 = sphi 0, %s249
      %s253 = sphi 0, %s252
      %s269 = sphi 0, %s253
    $region4: #{tpu_custom_call.1} parent=1 // loop_header_branch
      %22 = sbr.rel (%p20) target = $region8
    $region5: #{tpu_custom_call.1} parent=1 // loop_body
      %s24 = ssub.s32 %s19, 1
      %s25 = ssub.s32 %s19, 2
      %s26 = sadd.s32 %s19, 1
      %s27 = ssub.s32 %s19, %s26
      %p28 = scmp.eq.s32.totalorder %s27, 0
      %s30 = sadd.s32 %s29, 1
      %s31 = scalar_select %p28, %s29, %s30
      %p34 = pneg %p28
      %p35 = scmp.eq.s32.totalorder %s19, 1
      %p36 = por %p34, %p35
      %p37 = scmp.ne.s32.totalorder %s29, %s32
      %p38 = scmp.eq.s32.totalorder %s19, 0
      %p39 = por %p37, %p38
      %p40 = scmp.ne.s32.totalorder %s29, %s32
      %p41 = scmp.eq.s32.totalorder %s24, 1
      %p42 = por %p40, %p41
      %p43 = scmp.ne.s32.totalorder %s32, %s33
      %p44 = scmp.eq.s32.totalorder %s24, 0
      %p45 = por %p43, %p44
      %p46 = scmp.ne.s32.totalorder %s32, %s33
      %p47 = scmp.eq.s32.totalorder %s25, 1
      %p48 = por %p46, %p47
      %p50 = scmp.ne.s32.totalorder %s33, %s49
      %p51 = scmp.eq.s32.totalorder %s25, 0
      %p52 = por %p50, %p51
      %s53 = ssub.s32 %s19, %s26
      %p54 = scmp.eq.s32.totalorder %s53, 0
      %s56 = sadd.s32 %s55, 1
      %s57 = scalar_select %p54, %s55, %s56
      %p60 = pneg %p54
      %p61 = scmp.eq.s32.totalorder %s19, 1
      %p62 = por %p60, %p61
      %p63 = scmp.ne.s32.totalorder %s55, %s58
      %p64 = scmp.eq.s32.totalorder %s19, 0
      %p65 = por %p63, %p64
      %p66 = scmp.ne.s32.totalorder %s55, %s58
      %p67 = scmp.eq.s32.totalorder %s24, 1
      %p68 = por %p66, %p67
      %p69 = scmp.ne.s32.totalorder %s58, %s59
      %p70 = scmp.eq.s32.totalorder %s24, 0
      %p71 = por %p69, %p70
      %p72 = scmp.ne.s32.totalorder %s58, %s59
      %p73 = scmp.eq.s32.totalorder %s25, 1
      %p74 = por %p72, %p73
      %p76 = scmp.ne.s32.totalorder %s59, %s75
      %p77 = scmp.eq.s32.totalorder %s25, 0
      %p78 = por %p76, %p77
      %s80 = sadd.s32 %s79, 1
      %p83 = scmp.eq.s32.totalorder %s19, 1
      %p84 = scmp.ne.s32.totalorder %s79, %s81
      %p85 = scmp.eq.s32.totalorder %s19, 0
      %p86 = por %p84, %p85
      %p87 = scmp.ne.s32.totalorder %s79, %s81
      %p88 = scmp.eq.s32.totalorder %s24, 1
      %p89 = por %p87, %p88
      %p90 = scmp.ne.s32.totalorder %s81, %s82
      %p91 = scmp.eq.s32.totalorder %s24, 0
      %p92 = por %p90, %p91
      %p93 = scmp.ne.s32.totalorder %s81, %s82
      %p94 = scmp.eq.s32.totalorder %s25, 1
      %p95 = por %p93, %p94
      %p97 = scmp.ne.s32.totalorder %s82, %s96
      %p98 = scmp.eq.s32.totalorder %s25, 0
      %p99 = por %p97, %p98
      %s101 = sadd.s32 %s100, 1
      %p104 = scmp.eq.s32.totalorder %s19, 1
      %p105 = scmp.ne.s32.totalorder %s100, %s102
      %p106 = scmp.eq.s32.totalorder %s19, 0
      %p107 = por %p105, %p106
      %p108 = scmp.ne.s32.totalorder %s100, %s102
      %p109 = scmp.eq.s32.totalorder %s24, 1
      %p110 = por %p108, %p109
      %p111 = scmp.ne.s32.totalorder %s102, %s103
      %p112 = scmp.eq.s32.totalorder %s24, 0
      %p113 = por %p111, %p112
      %p114 = scmp.ne.s32.totalorder %s102, %s103
      %p115 = scmp.eq.s32.totalorder %s25, 1
      %p116 = por %p114, %p115
      %p118 = scmp.ne.s32.totalorder %s103, %s117
      %p119 = scmp.eq.s32.totalorder %s25, 0
      %p120 = por %p118, %p119
      %s122 = sadd.s32 %s121, 1
      %p125 = scmp.eq.s32.totalorder %s19, 1
      %p126 = scmp.ne.s32.totalorder %s121, %s123
      %p127 = scmp.eq.s32.totalorder %s19, 0
      %p128 = por %p126, %p127
      %p129 = scmp.ne.s32.totalorder %s121, %s123
      %p130 = scmp.eq.s32.totalorder %s24, 1
      %p131 = por %p129, %p130
      %p132 = scmp.ne.s32.totalorder %s123, %s124
      %p133 = scmp.eq.s32.totalorder %s24, 0
      %p134 = por %p132, %p133
      %p135 = scmp.ne.s32.totalorder %s123, %s124
      %p136 = scmp.eq.s32.totalorder %s25, 1
      %p137 = por %p135, %p136
      %p139 = scmp.ne.s32.totalorder %s124, %s138
      %p140 = scmp.eq.s32.totalorder %s25, 0
      %p141 = por %p139, %p140
      %s143 = sadd.s32 %s142, 1
      %p146 = scmp.eq.s32.totalorder %s19, 1
      %p147 = scmp.ne.s32.totalorder %s142, %s144
      %p148 = scmp.eq.s32.totalorder %s19, 0
      %p149 = por %p147, %p148
      %p150 = scmp.ne.s32.totalorder %s142, %s144
      %p151 = scmp.eq.s32.totalorder %s24, 1
      %p152 = por %p150, %p151
      %p153 = scmp.ne.s32.totalorder %s144, %s145
      %p154 = scmp.eq.s32.totalorder %s24, 0
      %p155 = por %p153, %p154
      %p156 = scmp.ne.s32.totalorder %s144, %s145
      %p157 = scmp.eq.s32.totalorder %s25, 1
      %p158 = por %p156, %p157
      %p160 = scmp.ne.s32.totalorder %s145, %s159
      %p161 = scmp.eq.s32.totalorder %s25, 0
      %p162 = por %p160, %p161
      %s164 = sadd.s32 %s163, 1
      %p167 = scmp.eq.s32.totalorder %s19, 1
      %p168 = scmp.ne.s32.totalorder %s163, %s165
      %p169 = scmp.eq.s32.totalorder %s19, 0
      %p170 = por %p168, %p169
      %p171 = scmp.ne.s32.totalorder %s163, %s165
      %p172 = scmp.eq.s32.totalorder %s24, 1
      %p173 = por %p171, %p172
      %p174 = scmp.ne.s32.totalorder %s165, %s166
      %p175 = scmp.eq.s32.totalorder %s24, 0
      %p176 = por %p174, %p175
      %p177 = scmp.ne.s32.totalorder %s165, %s166
      %p178 = scmp.eq.s32.totalorder %s25, 1
      %p179 = por %p177, %p178
      %p181 = scmp.ne.s32.totalorder %s166, %s180
      %p182 = scmp.eq.s32.totalorder %s25, 0
      %p183 = por %p181, %p182
      %s185 = sadd.s32 %s184, 1
      %p188 = scmp.eq.s32.totalorder %s19, 1
      %p189 = scmp.ne.s32.totalorder %s184, %s186
      %p190 = scmp.eq.s32.totalorder %s19, 0
      %p191 = por %p189, %p190
      %p192 = scmp.ne.s32.totalorder %s184, %s186
      %p193 = scmp.eq.s32.totalorder %s24, 1
      %p194 = por %p192, %p193
      %p195 = scmp.ne.s32.totalorder %s186, %s187
      %p196 = scmp.eq.s32.totalorder %s24, 0
      %p197 = por %p195, %p196
      %p198 = scmp.ne.s32.totalorder %s186, %s187
      %p199 = scmp.eq.s32.totalorder %s25, 1
      %p200 = por %p198, %p199
      %p202 = scmp.ne.s32.totalorder %s187, %s201
      %p203 = scmp.eq.s32.totalorder %s25, 0
      %p204 = por %p202, %p203
      %s206 = sadd.s32 %s205, 1
      %p209 = scmp.eq.s32.totalorder %s19, 1
      %p210 = scmp.ne.s32.totalorder %s205, %s207
      %p211 = scmp.eq.s32.totalorder %s19, 0
      %p212 = por %p210, %p211
      %p213 = scmp.ne.s32.totalorder %s205, %s207
      %p214 = scmp.eq.s32.totalorder %s24, 1
      %p215 = por %p213, %p214
      %p216 = scmp.ne.s32.totalorder %s207, %s208
      %p217 = scmp.eq.s32.totalorder %s24, 0
      %p218 = por %p216, %p217
      %p219 = scmp.ne.s32.totalorder %s207, %s208
      %p220 = scmp.eq.s32.totalorder %s25, 1
      %p221 = por %p219, %p220
      %p223 = scmp.ne.s32.totalorder %s208, %s222
      %p224 = scmp.eq.s32.totalorder %s25, 0
      %p225 = por %p223, %p224
      %s227 = sadd.s32 %s226, 1
      %p230 = scmp.eq.s32.totalorder %s19, 1
      %p231 = scmp.ne.s32.totalorder %s226, %s228
      %p232 = scmp.eq.s32.totalorder %s19, 0
      %p233 = por %p231, %p232
      %p234 = scmp.ne.s32.totalorder %s226, %s228
      %p235 = scmp.eq.s32.totalorder %s24, 1
      %p236 = por %p234, %p235
      %p237 = scmp.ne.s32.totalorder %s228, %s229
      %p238 = scmp.eq.s32.totalorder %s24, 0
      %p239 = por %p237, %p238
      %p240 = scmp.ne.s32.totalorder %s228, %s229
      %p241 = scmp.eq.s32.totalorder %s25, 1
      %p242 = por %p240, %p241
      %p244 = scmp.ne.s32.totalorder %s229, %s243
      %p245 = scmp.eq.s32.totalorder %s25, 0
      %p246 = por %p244, %p245
      %s247 = ssub.s32 %s19, %s26
      %p248 = scmp.eq.s32.totalorder %s247, 0
      %s250 = sadd.s32 %s249, 1
      %s251 = scalar_select %p248, %s249, %s250
      %p254 = pneg %p248
      %p255 = scmp.eq.s32.totalorder %s19, 1
      %p256 = por %p254, %p255
      %p257 = scmp.ne.s32.totalorder %s249, %s252
      %p258 = scmp.eq.s32.totalorder %s19, 0
      %p259 = por %p257, %p258
      %p260 = scmp.ne.s32.totalorder %s249, %s252
      %p261 = scmp.eq.s32.totalorder %s24, 1
      %p262 = por %p260, %p261
      %p263 = scmp.ne.s32.totalorder %s252, %s253
      %p264 = scmp.eq.s32.totalorder %s24, 0
      %p265 = por %p263, %p264
      %p266 = scmp.ne.s32.totalorder %s252, %s253
      %p267 = scmp.eq.s32.totalorder %s25, 1
      %p268 = por %p266, %p267
      %p270 = scmp.ne.s32.totalorder %s253, %s269
      %p271 = scmp.eq.s32.totalorder %s25, 0
      %p272 = por %p270, %p271
      %p273 = scmp.le.s32.totalorder 1, %s19
      %p274 = scmp.lt.s32.totalorder %s19, 3
      %p275 = pnand %p273, %p274
      %p276 = pneg %p275
      // Predicated region
      $region9: #{tpu_custom_call.1} parent=5 // pred_check
        _
      $region10: #{tpu_custom_call.1} parent=5 // pred_check_branch
        %278 = sbr.rel (%p275) target = $region12
      $region11: #{tpu_custom_call.1} parent=5 // pred_region
        %s279 = ssub.s32 %s19, 1
        // Predicated region
        $region13: #{tpu_custom_call.1} parent=11 // pred_check
          %p280 = pneg %p92
        $region14: #{tpu_custom_call.1} parent=11 // pred_check_branch
          %282 = sbr.rel (%p280) target = $region16
        $region15: #{tpu_custom_call.1} parent=11 // pred_region
          _
        $region16: #{tpu_custom_call.1} parent=11 // pred_fallthru
          _
        // Predicated region
        $region17: #{tpu_custom_call.1} parent=11 // pred_check
          %p283 = pneg %p113
        $region18: #{tpu_custom_call.1} parent=11 // pred_check_branch
          %285 = sbr.rel (%p283) target = $region20
        $region19: #{tpu_custom_call.1} parent=11 // pred_region
          _
        $region20: #{tpu_custom_call.1} parent=11 // pred_fallthru
          _
        // Predicated region
        $region21: #{tpu_custom_call.1} parent=11 // pred_check
          %p286 = pneg %p134
        $region22: #{tpu_custom_call.1} parent=11 // pred_check_branch
          %288 = sbr.rel (%p286) target = $region24
        $region23: #{tpu_custom_call.1} parent=11 // pred_region
          _
        $region24: #{tpu_custom_call.1} parent=11 // pred_fallthru
          _
        // Predicated region
        $region25: #{tpu_custom_call.1} parent=11 // pred_check
          %p289 = pneg %p155
        $region26: #{tpu_custom_call.1} parent=11 // pred_check_branch
          %291 = sbr.rel (%p289) target = $region28
        $region27: #{tpu_custom_call.1} parent=11 // pred_region
          _
        $region28: #{tpu_custom_call.1} parent=11 // pred_fallthru
          _
        // Predicated region
        $region29: #{tpu_custom_call.1} parent=11 // pred_check
          %p292 = pneg %p176
        $region30: #{tpu_custom_call.1} parent=11 // pred_check_branch
          %294 = sbr.rel (%p292) target = $region32
        $region31: #{tpu_custom_call.1} parent=11 // pred_region
          _
        $region32: #{tpu_custom_call.1} parent=11 // pred_fallthru
          _
        // Predicated region
        $region33: #{tpu_custom_call.1} parent=11 // pred_check
          %p295 = pneg %p197
        $region34: #{tpu_custom_call.1} parent=11 // pred_check_branch
          %297 = sbr.rel (%p295) target = $region36
        $region35: #{tpu_custom_call.1} parent=11 // pred_region
          _
        $region36: #{tpu_custom_call.1} parent=11 // pred_fallthru
          _
        // Predicated region
        $region37: #{tpu_custom_call.1} parent=11 // pred_check
          %p298 = pneg %p218
        $region38: #{tpu_custom_call.1} parent=11 // pred_check_branch
          %300 = sbr.rel (%p298) target = $region40
        $region39: #{tpu_custom_call.1} parent=11 // pred_region
          _
        $region40: #{tpu_custom_call.1} parent=11 // pred_fallthru
          _
        // Predicated region
        $region41: #{tpu_custom_call.1} parent=11 // pred_check
          %p301 = pneg %p239
        $region42: #{tpu_custom_call.1} parent=11 // pred_check_branch
          %303 = sbr.rel (%p301) target = $region44
        $region43: #{tpu_custom_call.1} parent=11 // pred_region
          _
        $region44: #{tpu_custom_call.1} parent=11 // pred_fallthru
          _
      $region12: #{tpu_custom_call.1} parent=5 // pred_fallthru
        _
      %p304 = scmp.lt.s32.totalorder %s19, 2
      // Predicated region
      $region45: #{tpu_custom_call.1} parent=5 // pred_check
        %p305 = pneg %p304
      $region46: #{tpu_custom_call.1} parent=5 // pred_check_branch
        %307 = sbr.rel (%p305) target = $region48
      $region47: #{tpu_custom_call.1} parent=5 // pred_region
        // Predicated region
        $region49: #{tpu_custom_call.1} parent=47 // pred_check
          %p308 = pneg %p39
        $region50: #{tpu_custom_call.1} parent=47 // pred_check_branch
          %310 = sbr.rel (%p308) target = $region52
        $region51: #{tpu_custom_call.1} parent=47 // pred_region
          %s311 = smul.u32 16, %s19
          %p312 = scmp.lt.s32.totalorder %s311, 31
          %s313 = scalar_select %p312, %s311, 31
          %s314 = smul.addr %s313, 8
          %s315 = scalar_lea.vmem %s0, %s314
          %s316 = smul.u32 16, %s19
        $region52: #{tpu_custom_call.1} parent=47 // pred_fallthru
          _
        // Predicated region
        $region53: #{tpu_custom_call.1} parent=47 // pred_check
          %p317 = pneg %p65
        $region54: #{tpu_custom_call.1} parent=47 // pred_check_branch
          %319 = sbr.rel (%p317) target = $region56
        $region55: #{tpu_custom_call.1} parent=47 // pred_region
          %s320 = smul.u32 16, %s19
          %p321 = scmp.lt.s32.totalorder %s320, 31
          %s322 = scalar_select %p321, %s320, 31
          %s323 = smul.addr %s322, 8
          %s324 = scalar_lea.vmem %s1, %s323
          %s325 = smul.u32 16, %s19
        $region56: #{tpu_custom_call.1} parent=47 // pred_fallthru
          _
      $region48: #{tpu_custom_call.1} parent=5 // pred_fallthru
        _
      %p326 = scmp.le.s32.totalorder 1, %s19
      %p327 = scmp.lt.s32.totalorder %s19, 3
      %p328 = pnand %p326, %p327
      %p329 = pneg %p328
      // Predicated region
      $region57: #{tpu_custom_call.1} parent=5 // pred_check
        _
      $region58: #{tpu_custom_call.1} parent=5 // pred_check_branch
        %331 = sbr.rel (%p328) target = $region60
      $region59: #{tpu_custom_call.1} parent=5 // pred_region
        %s332 = ssub.s32 %s19, 1
        %s333 = smul.u32 16, %s24
        %p334 = scmp.lt.s32.totalorder %s333, 31
        %s335 = scalar_select %p334, %s333, 31
        %s336 = smul.addr %s335, 8
        %s337 = scalar_lea.vmem %s0, %s336
        %p338 = pneg %p45
        %p339 = pneg %p42
        %s340 = smul.u32 16, %s24
        %p341 = scmp.lt.s32.totalorder %s340, 31
        %s342 = scalar_select %p341, %s340, 31
        %s343 = smul.addr %s342, 8
        %s344 = scalar_lea.vmem %s1, %s343
        %p345 = pneg %p71
        %p346 = pneg %p68
        %p347 = pneg %p92
        %p348 = pneg %p89
        %p349 = pneg %p113
        %p350 = pneg %p110
        %p351 = pneg %p134
        %p352 = pneg %p131
        %p353 = pneg %p155
        %p354 = pneg %p152
        %p355 = pneg %p176
        %p356 = pneg %p173
        %p357 = pneg %p197
        %p358 = pneg %p194
        %p359 = pneg %p218
        %p360 = pneg %p215
        %p361 = pneg %p239
        %p362 = pneg %p236
        %p363 = pneg %p265
        %p364 = pneg %p262
        %s365 = sand.u32 %s252, 1
        %s366 = scalar_lea.sflag [#allocation3], %s365
        %s367 = sand.u32 %s252, 1
        %s368 = smul.addr %s367, 512
        %s369 = scalar_lea.vmem [#allocation2], %s368
        %s370 = smul.u32 16, %s24
        %p371 = scmp.lt.s32.totalorder %s370, 31
        %s372 = scalar_select %p371, %s370, 31
        %s373 = smul.addr %s372, 8
        %s374 = scalar_lea.vmem %s0, %s373
        %s375 = smul.u32 16, %s24
        %s376 = smul.u32 16, %s24
        %p377 = scmp.lt.s32.totalorder %s376, 31
        %s378 = scalar_select %p377, %s376, 31
        %s379 = smul.addr %s378, 8
        %s380 = scalar_lea.vmem %s1, %s379
        %s381 = smul.u32 16, %s24
        %s382 = smul.u32 16, %s24
        %v384 = vld [vmem:[%s374] sm:$0xff]
        %v385 = vld [vmem:[%s374 + $0x8] sm:$0xff]
        %v386 = vld [vmem:[%s374 + $0x10] sm:$0xff]
        %v387 = vld [vmem:[%s374 + $0x18] sm:$0xff]
        %v388 = vld [vmem:[%s374 + $0x20] sm:$0xff]
        %v389 = vld [vmem:[%s374 + $0x28] sm:$0xff]
        %v390 = vld [vmem:[%s374 + $0x30] sm:$0xff]
        %v391 = vld [vmem:[%s374 + $0x38] sm:$0xff]
        %v392 = vld [vmem:[%s374 + $0x40] sm:$0xff]
        %v393 = vld [vmem:[%s374 + $0x48] sm:$0xff]
        %v394 = vld [vmem:[%s374 + $0x50] sm:$0xff]
        %v395 = vld [vmem:[%s374 + $0x58] sm:$0xff]
        %v396 = vld [vmem:[%s374 + $0x60] sm:$0xff]
        %v397 = vld [vmem:[%s374 + $0x68] sm:$0xff]
        %v398 = vld [vmem:[%s374 + $0x70] sm:$0xff]
        %v399 = vld [vmem:[%s374 + $0x78] sm:$0xff]
        %v400 = vmul.f32 %v384, 7.0
        %v401 = vmul.f32 %v385, 7.0
        %v402 = vmul.f32 %v386, 7.0
        %v403 = vmul.f32 %v387, 7.0
        %v404 = vmul.f32 %v388, 7.0
        %v405 = vmul.f32 %v389, 7.0
        %v406 = vmul.f32 %v390, 7.0
        %v407 = vmul.f32 %v391, 7.0
        %v408 = vmul.f32 %v392, 7.0
        %v409 = vmul.f32 %v393, 7.0
        %v410 = vmul.f32 %v394, 7.0
        %v411 = vmul.f32 %v395, 7.0
        %v412 = vmul.f32 %v396, 7.0
        %v413 = vmul.f32 %v397, 7.0
        %v414 = vmul.f32 %v398, 7.0
        %v415 = vmul.f32 %v399, 7.0
        %v416 = vfloor.f32 %v400
        %v417 = vfloor.f32 %v401
        %v418 = vfloor.f32 %v402
        %v419 = vfloor.f32 %v403
        %v420 = vfloor.f32 %v404
        %v421 = vfloor.f32 %v405
        %v422 = vfloor.f32 %v406
        %v423 = vfloor.f32 %v407
        %v424 = vfloor.f32 %v408
        %v425 = vfloor.f32 %v409
        %v426 = vfloor.f32 %v410
        %v427 = vfloor.f32 %v411
        %v428 = vfloor.f32 %v412
        %v429 = vfloor.f32 %v413
        %v430 = vfloor.f32 %v414
        %v431 = vfloor.f32 %v415
        %v432 = vpack.c.bf16 %v417, %v416
        %v433 = vpack.c.bf16 %v419, %v418
        %v434 = vpack.c.bf16 %v421, %v420
        %v435 = vpack.c.bf16 %v423, %v422
        %v436 = vpack.c.bf16 %v425, %v424
        %v437 = vpack.c.bf16 %v427, %v426
        %v438 = vpack.c.bf16 %v429, %v428
        %v439 = vpack.c.bf16 %v431, %v430
        %v440 = vld [vmem:[%s2] sm:$0xf]
        %v441 = vld [vmem:[%s2 + $0x4] sm:$0xf]
        %v442 = vld [vmem:[%s2 + $0x8] sm:$0xf]
        %v443 = vld [vmem:[%s2 + $0xc] sm:$0xf]
        %v444 = vld [vmem:[%s2 + $0x10] sm:$0xf]
        %v445 = vld [vmem:[%s2 + $0x14] sm:$0xf]
        %v446 = vld [vmem:[%s2 + $0x18] sm:$0xf]
        %v447 = vld [vmem:[%s2 + $0x1c] sm:$0xf]
        %v448 = vld [vmem:[%s3] sm:$0x1]
        %v450 = vlaneseq
        %v451 = vshrl.u32 %v450, 7
        %v452 = vsub.s32 0, %v451
        %v453 = vrot.slane %v448, %v452
        %v463 = vunpack.c.l.b16 %v440
        %v464 = vunpack.c.l.b16 %v441
        %v465 = vunpack.c.l.b16 %v442
        %v466 = vunpack.c.l.b16 %v443
        %v467 = vunpack.c.l.b16 %v444
        %v468 = vunpack.c.l.b16 %v445
        %v469 = vunpack.c.l.b16 %v446
        %v470 = vunpack.c.l.b16 %v447
        %v471 = vpack.c.b16 %v464, %v463
        %v472 = vpack.c.b16 %v466, %v465
        %v473 = vpack.c.b16 %v468, %v467
        %v474 = vpack.c.b16 %v470, %v469
        %vm479 = vcmask 523264
        %v481 = vsel %vm479, %v432, 0
        %v484 = vsel %vm479, %v433, 0
        %v487 = vsel %vm479, %v434, 0
        %v490 = vsel %vm479, %v435, 0
        %v493 = vsel %vm479, %v436, 0
        %v496 = vsel %vm479, %v437, 0
        %v499 = vsel %vm479, %v438, 0
        %v502 = vsel %vm479, %v439, 0
        %504 = vmatprep.subr.bf16.mxu0 0
        %505 = vmatpush1.bf16.msra.mxu0 %v471
        %506 = vmatprep.subr.bf16.mxu0 0
        %507 = vmatpush1.bf16.msra.mxu0 %v472
        %508 = vmatprep.subr.bf16.mxu0 0
        %509 = vmatpush1.bf16.msra.mxu0 %v473
        %510 = vmatprep.subr.bf16.mxu0 0
        %511 = vmatpush1.bf16.msra.mxu0 %v474
        %512 = vmatprep.subr.bf16.mxu0 0
        %513 = vmatpush1.bf16.msra.mxu0 0
        %514 = vmatprep.subr.bf16.mxu0 0
        %515 = vmatpush1.bf16.msra.mxu0 0
        %516 = vmatprep.subr.bf16.mxu0 0
        %517 = vmatpush1.bf16.msra.mxu0 0
        %518 = vmatprep.subr.bf16.mxu0 0
        %519 = vmatpush1.bf16.msra.mxu0 0
        %520 = vmatprep.subr.bf16.mxu0 0
        %521 = vmatpush1.bf16.msra.mxu0 0
        %522 = vmatprep.subr.bf16.mxu0 0
        %523 = vmatpush1.bf16.msra.mxu0 0
        %524 = vmatprep.subr.bf16.mxu0 0
        %525 = vmatpush1.bf16.msra.mxu0 0
        %526 = vmatprep.subr.bf16.mxu0 0
        %527 = vmatpush1.bf16.msra.mxu0 0
        %528 = vmatprep.subr.bf16.mxu0 0
        %529 = vmatpush1.bf16.msra.mxu0 0
        %530 = vmatprep.subr.bf16.mxu0 0
        %531 = vmatpush1.bf16.msra.mxu0 0
        %532 = vmatprep.subr.bf16.mxu0 0
        %533 = vmatpush1.bf16.msra.mxu0 0
        %534 = vmatprep.subr.bf16.mxu0 0
        %535 = vmatpush1.bf16.msra.mxu0 0
        %536 = vmatprep.mubr.bf16.mxu0 0
        %537 = vmatmul.mubr.bf16.gmra.mrb[0].mxu0 %v481
        %v538 = vpop.f32.mrb[0].mxu0
        %v539 = vadd.f32 %v453, %v538
        %v540 = vpop.f32.mrb[0].mxu0
        %v541 = vpop.f32.mrb[0].mxu0
        %v542 = vadd.f32 %v453, %v541
        %v543 = vpop.f32.mrb[0].mxu0
        %544 = vmatprep.mubr.bf16.mxu0 0
        %545 = vmatmul.mubr.bf16.gmra.mrb[0].mxu0 %v484
        %v546 = vpop.f32.mrb[0].mxu0
        %v547 = vadd.f32 %v453, %v546
        %v548 = vpop.f32.mrb[0].mxu0
        %v549 = vpop.f32.mrb[0].mxu0
        %v550 = vadd.f32 %v453, %v549
        %v551 = vpop.f32.mrb[0].mxu0
        %552 = vmatprep.mubr.bf16.mxu0 0
        %553 = vmatmul.mubr.bf16.gmra.mrb[0].mxu0 %v487
        %v554 = vpop.f32.mrb[0].mxu0
        %v555 = vadd.f32 %v453, %v554
        %v556 = vpop.f32.mrb[0].mxu0
        %v557 = vpop.f32.mrb[0].mxu0
        %v558 = vadd.f32 %v453, %v557
        %v559 = vpop.f32.mrb[0].mxu0
        %560 = vmatprep.mubr.bf16.mxu0 0
        %561 = vmatmul.mubr.bf16.gmra.mrb[0].mxu0 %v490
        %v562 = vpop.f32.mrb[0].mxu0
        %v563 = vadd.f32 %v453, %v562
        %v564 = vpop.f32.mrb[0].mxu0
        %v565 = vpop.f32.mrb[0].mxu0
        %v566 = vadd.f32 %v453, %v565
        %v567 = vpop.f32.mrb[0].mxu0
        %568 = vmatprep.mubr.bf16.mxu0 0
        %569 = vmatmul.mubr.bf16.gmra.mrb[0].mxu0 %v493
        %v570 = vpop.f32.mrb[0].mxu0
        %v571 = vadd.f32 %v453, %v570
        %v572 = vpop.f32.mrb[0].mxu0
        %v573 = vpop.f32.mrb[0].mxu0
        %v574 = vadd.f32 %v453, %v573
        %v575 = vpop.f32.mrb[0].mxu0
        %576 = vmatprep.mubr.bf16.mxu0 0
        %577 = vmatmul.mubr.bf16.gmra.mrb[0].mxu0 %v496
        %v578 = vpop.f32.mrb[0].mxu0
        %v579 = vadd.f32 %v453, %v578
        %v580 = vpop.f32.mrb[0].mxu0
        %v581 = vpop.f32.mrb[0].mxu0
        %v582 = vadd.f32 %v453, %v581
        %v583 = vpop.f32.mrb[0].mxu0
        %584 = vmatprep.mubr.bf16.mxu0 0
        %585 = vmatmul.mubr.bf16.gmra.mrb[0].mxu0 %v499
        %v586 = vpop.f32.mrb[0].mxu0
        %v587 = vadd.f32 %v453, %v586
        %v588 = vpop.f32.mrb[0].mxu0
        %v589 = vpop.f32.mrb[0].mxu0
        %v590 = vadd.f32 %v453, %v589
        %v591 = vpop.f32.mrb[0].mxu0
        %592 = vmatprep.mubr.bf16.mxu0 0
        %593 = vmatmul.mubr.bf16.gmra.mrb[0].mxu0 %v502
        %v594 = vpop.f32.mrb[0].mxu0
        %v595 = vadd.f32 %v453, %v594
        %v596 = vpop.f32.mrb[0].mxu0
        %v597 = vpop.f32.mrb[0].mxu0
        %v598 = vadd.f32 %v453, %v597
        %v599 = vpop.f32.mrb[0].mxu0
        %600 = vdwg.mxu0
        %v601 = vmax.f32 %v539, 0.0
        %v602 = vmax.f32 %v542, 0.0
        %v603 = vmax.f32 %v547, 0.0
        %v604 = vmax.f32 %v550, 0.0
        %v605 = vmax.f32 %v555, 0.0
        %v606 = vmax.f32 %v558, 0.0
        %v607 = vmax.f32 %v563, 0.0
        %v608 = vmax.f32 %v566, 0.0
        %v609 = vmax.f32 %v571, 0.0
        %v610 = vmax.f32 %v574, 0.0
        %v611 = vmax.f32 %v579, 0.0
        %v612 = vmax.f32 %v582, 0.0
        %v613 = vmax.f32 %v587, 0.0
        %v614 = vmax.f32 %v590, 0.0
        %v615 = vmax.f32 %v595, 0.0
        %v616 = vmax.f32 %v598, 0.0
        %v617 = vpack.c.bf16 %v602, %v601
        %v618 = vpack.c.bf16 %v604, %v603
        %v619 = vpack.c.bf16 %v606, %v605
        %v620 = vpack.c.bf16 %v608, %v607
        %v621 = vpack.c.bf16 %v610, %v609
        %v622 = vpack.c.bf16 %v612, %v611
        %v623 = vpack.c.bf16 %v614, %v613
        %v624 = vpack.c.bf16 %v616, %v615
        %v625 = vld [vmem:[%s4] sm:$0xf]
        %v626 = vld [vmem:[%s4 + $0x4] sm:$0xf]
        %v627 = vld [vmem:[%s4 + $0x8] sm:$0xf]
        %v628 = vld [vmem:[%s4 + $0xc] sm:$0xf]
        %v629 = vld [vmem:[%s5] sm:$0x1]
        %v631 = vlaneseq
        %v632 = vshrl.u32 %v631, 7
        %v633 = vsub.s32 0, %v632
        %v634 = vrot.slane %v629, %v633
        %v640 = vunpack.c.l.b16 %v625
        %v641 = vunpack.c.l.b16 %v626
        %v642 = vunpack.c.l.b16 %v627
        %v643 = vunpack.c.l.b16 %v628
        %v644 = vpack.c.b16 %v641, %v640
        %v645 = vpack.c.b16 %v643, %v642
        %vm648 = vcmask 261120
        %v650 = vsel %vm648, %v617, 0
        %v653 = vsel %vm648, %v618, 0
        %v656 = vsel %vm648, %v619, 0
        %v659 = vsel %vm648, %v620, 0
        %v662 = vsel %vm648, %v621, 0
        %v665 = vsel %vm648, %v622, 0
        %v668 = vsel %vm648, %v623, 0
        %v671 = vsel %vm648, %v624, 0
        %673 = vmatprep.subr.bf16.mxu0 0
        %674 = vmatpush1.bf16.msra.mxu0 %v644
        %675 = vmatprep.subr.bf16.mxu0 0
        %676 = vmatpush1.bf16.msra.mxu0 %v645
        %677 = vmatprep.subr.bf16.mxu0 0
        %678 = vmatpush1.bf16.msra.mxu0 0
        %679 = vmatprep.subr.bf16.mxu0 0
        %680 = vmatpush1.bf16.msra.mxu0 0
        %681 = vmatprep.subr.bf16.mxu0 0
        %682 = vmatpush1.bf16.msra.mxu0 0
        %683 = vmatprep.subr.bf16.mxu0 0
        %684 = vmatpush1.bf16.msra.mxu0 0
        %685 = vmatprep.subr.bf16.mxu0 0
        %686 = vmatpush1.bf16.msra.mxu0 0
        %687 = vmatprep.subr.bf16.mxu0 0
        %688 = vmatpush1.bf16.msra.mxu0 0
        %689 = vmatprep.subr.bf16.mxu0 0
        %690 = vmatpush1.bf16.msra.mxu0 0
        %691 = vmatprep.subr.bf16.mxu0 0
        %692 = vmatpush1.bf16.msra.mxu0 0
        %693 = vmatprep.subr.bf16.mxu0 0
        %694 = vmatpush1.bf16.msra.mxu0 0
        %695 = vmatprep.subr.bf16.mxu0 0
        %696 = vmatpush1.bf16.msra.mxu0 0
        %697 = vmatprep.subr.bf16.mxu0 0
        %698 = vmatpush1.bf16.msra.mxu0 0
        %699 = vmatprep.subr.bf16.mxu0 0
        %700 = vmatpush1.bf16.msra.mxu0 0
        %701 = vmatprep.subr.bf16.mxu0 0
        %702 = vmatpush1.bf16.msra.mxu0 0
        %703 = vmatprep.subr.bf16.mxu0 0
        %704 = vmatpush1.bf16.msra.mxu0 0
        %705 = vmatprep.mubr.bf16.mxu0 0
        %706 = vmatmul.mubr.bf16.gmra.mrb[0].mxu0 %v650
        %v707 = vpop.f32.mrb[0].mxu0
        %v708 = vadd.f32 %v634, %v707
        %v709 = vpop.f32.mrb[0].mxu0
        %v710 = vpop.f32.mrb[0].mxu0
        %v711 = vadd.f32 %v634, %v710
        %v712 = vpop.f32.mrb[0].mxu0
        %713 = vmatprep.mubr.bf16.mxu0 0
        %714 = vmatmul.mubr.bf16.gmra.mrb[0].mxu0 %v653
        %v715 = vpop.f32.mrb[0].mxu0
        %v716 = vadd.f32 %v634, %v715
        %v717 = vpop.f32.mrb[0].mxu0
        %v718 = vpop.f32.mrb[0].mxu0
        %v719 = vadd.f32 %v634, %v718
        %v720 = vpop.f32.mrb[0].mxu0
        %721 = vmatprep.mubr.bf16.mxu0 0
        %722 = vmatmul.mubr.bf16.gmra.mrb[0].mxu0 %v656
        %v723 = vpop.f32.mrb[0].mxu0
        %v724 = vadd.f32 %v634, %v723
        %v725 = vpop.f32.mrb[0].mxu0
        %v726 = vpop.f32.mrb[0].mxu0
        %v727 = vadd.f32 %v634, %v726
        %v728 = vpop.f32.mrb[0].mxu0
        %729 = vmatprep.mubr.bf16.mxu0 0
        %730 = vmatmul.mubr.bf16.gmra.mrb[0].mxu0 %v659
        %v731 = vpop.f32.mrb[0].mxu0
        %v732 = vadd.f32 %v634, %v731
        %v733 = vpop.f32.mrb[0].mxu0
        %v734 = vpop.f32.mrb[0].mxu0
        %v735 = vadd.f32 %v634, %v734
        %v736 = vpop.f32.mrb[0].mxu0
        %737 = vmatprep.mubr.bf16.mxu0 0
        %738 = vmatmul.mubr.bf16.gmra.mrb[0].mxu0 %v662
        %v739 = vpop.f32.mrb[0].mxu0
        %v740 = vadd.f32 %v634, %v739
        %v741 = vpop.f32.mrb[0].mxu0
        %v742 = vpop.f32.mrb[0].mxu0
        %v743 = vadd.f32 %v634, %v742
        %v744 = vpop.f32.mrb[0].mxu0
        %745 = vmatprep.mubr.bf16.mxu0 0
        %746 = vmatmul.mubr.bf16.gmra.mrb[0].mxu0 %v665
        %v747 = vpop.f32.mrb[0].mxu0
        %v748 = vadd.f32 %v634, %v747
        %v749 = vpop.f32.mrb[0].mxu0
        %v750 = vpop.f32.mrb[0].mxu0
        %v751 = vadd.f32 %v634, %v750
        %v752 = vpop.f32.mrb[0].mxu0
        %753 = vmatprep.mubr.bf16.mxu0 0
        %754 = vmatmul.mubr.bf16.gmra.mrb[0].mxu0 %v668
        %v755 = vpop.f32.mrb[0].mxu0
        %v756 = vadd.f32 %v634, %v755
        %v757 = vpop.f32.mrb[0].mxu0
        %v758 = vpop.f32.mrb[0].mxu0
        %v759 = vadd.f32 %v634, %v758
        %v760 = vpop.f32.mrb[0].mxu0
        %761 = vmatprep.mubr.bf16.mxu0 0
        %762 = vmatmul.mubr.bf16.gmra.mrb[0].mxu0 %v671
        %v763 = vpop.f32.mrb[0].mxu0
        %v764 = vadd.f32 %v634, %v763
        %v765 = vpop.f32.mrb[0].mxu0
        %v766 = vpop.f32.mrb[0].mxu0
        %v767 = vadd.f32 %v634, %v766
        %v768 = vpop.f32.mrb[0].mxu0
        %769 = vdwg.mxu0
        %v770 = vmul.f32 %v708, 0.5
        %v771 = vmul.f32 %v711, 0.5
        %v772 = vmul.f32 %v716, 0.5
        %v773 = vmul.f32 %v719, 0.5
        %v774 = vmul.f32 %v724, 0.5
        %v775 = vmul.f32 %v727, 0.5
        %v776 = vmul.f32 %v732, 0.5
        %v777 = vmul.f32 %v735, 0.5
        %v778 = vmul.f32 %v740, 0.5
        %v779 = vmul.f32 %v743, 0.5
        %v780 = vmul.f32 %v748, 0.5
        %v781 = vmul.f32 %v751, 0.5
        %v782 = vmul.f32 %v756, 0.5
        %v783 = vmul.f32 %v759, 0.5
        %v784 = vmul.f32 %v764, 0.5
        %v785 = vmul.f32 %v767, 0.5
        %v786 = vmul.f32 %v770, 1.442695
        %v787 = vpow.pop %v786
        %v788 = vmul.f32 %v771, 1.442695
        %v789 = vpow.pop %v788
        %v790 = vmul.f32 %v772, 1.442695
        %v791 = vpow.pop %v790
        %v792 = vmul.f32 %v773, 1.442695
        %v793 = vpow.pop %v792
        %v794 = vmul.f32 %v774, 1.442695
        %v795 = vpow.pop %v794
        %v796 = vmul.f32 %v775, 1.442695
        %v797 = vpow.pop %v796
        %v798 = vmul.f32 %v776, 1.442695
        %v799 = vpow.pop %v798
        %v800 = vmul.f32 %v777, 1.442695
        %v801 = vpow.pop %v800
        %v802 = vmul.f32 %v778, 1.442695
        %v803 = vpow.pop %v802
        %v804 = vmul.f32 %v779, 1.442695
        %v805 = vpow.pop %v804
        %v806 = vmul.f32 %v780, 1.442695
        %v807 = vpow.pop %v806
        %v808 = vmul.f32 %v781, 1.442695
        %v809 = vpow.pop %v808
        %v810 = vmul.f32 %v782, 1.442695
        %v811 = vpow.pop %v810
        %v812 = vmul.f32 %v783, 1.442695
        %v813 = vpow.pop %v812
        %v814 = vmul.f32 %v784, 1.442695
        %v815 = vpow.pop %v814
        %v816 = vmul.f32 %v785, 1.442695
        %v817 = vpow.pop %v816
        %v818 = vld [vmem:[%s380] sm:$0xff]
        %v819 = vld [vmem:[%s380 + $0x8] sm:$0xff]
        %v820 = vld [vmem:[%s380 + $0x10] sm:$0xff]
        %v821 = vld [vmem:[%s380 + $0x18] sm:$0xff]
        %v822 = vld [vmem:[%s380 + $0x20] sm:$0xff]
        %v823 = vld [vmem:[%s380 + $0x28] sm:$0xff]
        %v824 = vld [vmem:[%s380 + $0x30] sm:$0xff]
        %v825 = vld [vmem:[%s380 + $0x38] sm:$0xff]
        %v826 = vld [vmem:[%s380 + $0x40] sm:$0xff]
        %v827 = vld [vmem:[%s380 + $0x48] sm:$0xff]
        %v828 = vld [vmem:[%s380 + $0x50] sm:$0xff]
        %v829 = vld [vmem:[%s380 + $0x58] sm:$0xff]
        %v830 = vld [vmem:[%s380 + $0x60] sm:$0xff]
        %v831 = vld [vmem:[%s380 + $0x68] sm:$0xff]
        %v832 = vld [vmem:[%s380 + $0x70] sm:$0xff]
        %v833 = vld [vmem:[%s380 + $0x78] sm:$0xff]
        %850 = vrot.lane.b32.xlu0 %v818, 16
        %v851 = vpop.permute.xlu0 %850
        %852 = vrot.lane.b32.xlu0 %v819, 16
        %v853 = vpop.permute.xlu0 %852
        %854 = vrot.lane.b32.xlu0 %v820, 16
        %v855 = vpop.permute.xlu0 %854
        %856 = vrot.lane.b32.xlu0 %v821, 16
        %v857 = vpop.permute.xlu0 %856
        %858 = vrot.lane.b32.xlu0 %v822, 16
        %v859 = vpop.permute.xlu0 %858
        %860 = vrot.lane.b32.xlu0 %v823, 16
        %v861 = vpop.permute.xlu0 %860
        %862 = vrot.lane.b32.xlu0 %v824, 16
        %v863 = vpop.permute.xlu0 %862
        %864 = vrot.lane.b32.xlu0 %v825, 16
        %v865 = vpop.permute.xlu0 %864
        %866 = vrot.lane.b32.xlu0 %v826, 16
        %v867 = vpop.permute.xlu0 %866
        %868 = vrot.lane.b32.xlu0 %v827, 16
        %v869 = vpop.permute.xlu0 %868
        %870 = vrot.lane.b32.xlu0 %v828, 16
        %v871 = vpop.permute.xlu0 %870
        %872 = vrot.lane.b32.xlu0 %v829, 16
        %v873 = vpop.permute.xlu0 %872
        %874 = vrot.lane.b32.xlu0 %v830, 16
        %v875 = vpop.permute.xlu0 %874
        %876 = vrot.lane.b32.xlu0 %v831, 16
        %v877 = vpop.permute.xlu0 %876
        %878 = vrot.lane.b32.xlu0 %v832, 16
        %v879 = vpop.permute.xlu0 %878
        %880 = vrot.lane.b32.xlu0 %v833, 16
        %v881 = vpop.permute.xlu0 %880
        %v898 = vmul.f32 %v787, %v851
        %v899 = vmul.f32 %v789, %v853
        %v900 = vmul.f32 %v791, %v855
        %v901 = vmul.f32 %v793, %v857
        %v902 = vmul.f32 %v795, %v859
        %v903 = vmul.f32 %v797, %v861
        %v904 = vmul.f32 %v799, %v863
        %v905 = vmul.f32 %v801, %v865
        %v906 = vmul.f32 %v803, %v867
        %v907 = vmul.f32 %v805, %v869
        %v908 = vmul.f32 %v807, %v871
        %v909 = vmul.f32 %v809, %v873
        %v910 = vmul.f32 %v811, %v875
        %v911 = vmul.f32 %v813, %v877
        %v912 = vmul.f32 %v815, %v879
        %v913 = vmul.f32 %v817, %v881
        %930 = vrot.lane.b32.xlu0 %v898, 112
        %v931 = vpop.permute.xlu0 %930
        %932 = vrot.lane.b32.xlu0 %v899, 112
        %v933 = vpop.permute.xlu0 %932
        %934 = vrot.lane.b32.xlu0 %v900, 112
        %v935 = vpop.permute.xlu0 %934
        %936 = vrot.lane.b32.xlu0 %v901, 112
        %v937 = vpop.permute.xlu0 %936
        %938 = vrot.lane.b32.xlu0 %v902, 112
        %v939 = vpop.permute.xlu0 %938
        %940 = vrot.lane.b32.xlu0 %v903, 112
        %v941 = vpop.permute.xlu0 %940
        %942 = vrot.lane.b32.xlu0 %v904, 112
        %v943 = vpop.permute.xlu0 %942
        %944 = vrot.lane.b32.xlu0 %v905, 112
        %v945 = vpop.permute.xlu0 %944
        %946 = vrot.lane.b32.xlu0 %v906, 112
        %v947 = vpop.permute.xlu0 %946
        %948 = vrot.lane.b32.xlu0 %v907, 112
        %v949 = vpop.permute.xlu0 %948
        %950 = vrot.lane.b32.xlu0 %v908, 112
        %v951 = vpop.permute.xlu0 %950
        %952 = vrot.lane.b32.xlu0 %v909, 112
        %v953 = vpop.permute.xlu0 %952
        %954 = vrot.lane.b32.xlu0 %v910, 112
        %v955 = vpop.permute.xlu0 %954
        %956 = vrot.lane.b32.xlu0 %v911, 112
        %v957 = vpop.permute.xlu0 %956
        %958 = vrot.lane.b32.xlu0 %v912, 112
        %v959 = vpop.permute.xlu0 %958
        %960 = vrot.lane.b32.xlu0 %v913, 112
        %v961 = vpop.permute.xlu0 %960
        %v978 = vadd.f32 %v708, %v931
        %v979 = vadd.f32 %v711, %v933
        %v980 = vadd.f32 %v716, %v935
        %v981 = vadd.f32 %v719, %v937
        %v982 = vadd.f32 %v724, %v939
        %v983 = vadd.f32 %v727, %v941
        %v984 = vadd.f32 %v732, %v943
        %v985 = vadd.f32 %v735, %v945
        %v986 = vadd.f32 %v740, %v947
        %v987 = vadd.f32 %v743, %v949
        %v988 = vadd.f32 %v748, %v951
        %v989 = vadd.f32 %v751, %v953
        %v990 = vadd.f32 %v756, %v955
        %v991 = vadd.f32 %v759, %v957
        %v992 = vadd.f32 %v764, %v959
        %v993 = vadd.f32 %v767, %v961
        %v994 = vpack.c.bf16 %v979, %v978
        %v995 = vpack.c.bf16 %v981, %v980
        %v996 = vpack.c.bf16 %v983, %v982
        %v997 = vpack.c.bf16 %v985, %v984
        %v998 = vpack.c.bf16 %v987, %v986
        %v999 = vpack.c.bf16 %v989, %v988
        %v1000 = vpack.c.bf16 %v991, %v990
        %v1001 = vpack.c.bf16 %v993, %v992
        %v1002 = vld [vmem:[%s6] sm:$0xf]
        %v1003 = vld [vmem:[%s6 + $0x4] sm:$0xf]
        %v1004 = vld [vmem:[%s7] sm:$0x1]
        %v1006 = vlaneseq
        %v1007 = vshrl.u32 %v1006, 7
        %v1008 = vsub.s32 0, %v1007
        %v1009 = vrot.slane %v1004, %v1008
        %v1013 = vunpack.c.l.b16 %v1002
        %v1014 = vunpack.c.l.b16 %v1003
        %v1015 = vpack.c.b16 %v1014, %v1013
        %vm1017 = vcmask 130048
        %v1019 = vsel %vm1017, %v994, 0
        %v1022 = vsel %vm1017, %v995, 0
        %v1025 = vsel %vm1017, %v996, 0
        %v1028 = vsel %vm1017, %v997, 0
        %v1031 = vsel %vm1017, %v998, 0
        %v1034 = vsel %vm1017, %v999, 0
        %v1037 = vsel %vm1017, %v1000, 0
        %v1040 = vsel %vm1017, %v1001, 0
        %1042 = vmatprep.subr.bf16.mxu0 0
        %1043 = vmatpush1.bf16.msra.mxu0 %v1015
        %1044 = vmatprep.subr.bf16.mxu0 0
        %1045 = vmatpush1.bf16.msra.mxu0 0
        %1046 = vmatprep.subr.bf16.mxu0 0
        %1047 = vmatpush1.bf16.msra.mxu0 0
        %1048 = vmatprep.subr.bf16.mxu0 0
        %1049 = vmatpush1.bf16.msra.mxu0 0
        %1050 = vmatprep.subr.bf16.mxu0 0
        %1051 = vmatpush1.bf16.msra.mxu0 0
        %1052 = vmatprep.subr.bf16.mxu0 0
        %1053 = vmatpush1.bf16.msra.mxu0 0
        %1054 = vmatprep.subr.bf16.mxu0 0
        %1055 = vmatpush1.bf16.msra.mxu0 0
        %1056 = vmatprep.subr.bf16.mxu0 0
        %1057 = vmatpush1.bf16.msra.mxu0 0
        %1058 = vmatprep.subr.bf16.mxu0 0
        %1059 = vmatpush1.bf16.msra.mxu0 0
        %1060 = vmatprep.subr.bf16.mxu0 0
        %1061 = vmatpush1.bf16.msra.mxu0 0
        %1062 = vmatprep.subr.bf16.mxu0 0
        %1063 = vmatpush1.bf16.msra.mxu0 0
        %1064 = vmatprep.subr.bf16.mxu0 0
        %1065 = vmatpush1.bf16.msra.mxu0 0
        %1066 = vmatprep.subr.bf16.mxu0 0
        %1067 = vmatpush1.bf16.msra.mxu0 0
        %1068 = vmatprep.subr.bf16.mxu0 0
        %1069 = vmatpush1.bf16.msra.mxu0 0
        %1070 = vmatprep.subr.bf16.mxu0 0
        %1071 = vmatpush1.bf16.msra.mxu0 0
        %1072 = vmatprep.subr.bf16.mxu0 0
        %1073 = vmatpush1.bf16.msra.mxu0 0
        %1074 = vmatprep.mubr.bf16.mxu0 0
        %1075 = vmatmul.mubr.bf16.gmra.mrb[0].mxu0 %v1019
        %v1076 = vpop.f32.mrb[0].mxu0
        %v1077 = vadd.f32 %v1009, %v1076
        %v1078 = vpop.f32.mrb[0].mxu0
        %v1079 = vpop.f32.mrb[0].mxu0
        %v1080 = vadd.f32 %v1009, %v1079
        %v1081 = vpop.f32.mrb[0].mxu0
        %1082 = vmatprep.mubr.bf16.mxu0 0
        %1083 = vmatmul.mubr.bf16.gmra.mrb[0].mxu0 %v1022
        %v1084 = vpop.f32.mrb[0].mxu0
        %v1085 = vadd.f32 %v1009, %v1084
        %v1086 = vpop.f32.mrb[0].mxu0
        %v1087 = vpop.f32.mrb[0].mxu0
        %v1088 = vadd.f32 %v1009, %v1087
        %v1089 = vpop.f32.mrb[0].mxu0
        %1090 = vmatprep.mubr.bf16.mxu0 0
        %1091 = vmatmul.mubr.bf16.gmra.mrb[0].mxu0 %v1025
        %v1092 = vpop.f32.mrb[0].mxu0
        %v1093 = vadd.f32 %v1009, %v1092
        %v1094 = vpop.f32.mrb[0].mxu0
        %v1095 = vpop.f32.mrb[0].mxu0
        %v1096 = vadd.f32 %v1009, %v1095
        %v1097 = vpop.f32.mrb[0].mxu0
        %1098 = vmatprep.mubr.bf16.mxu0 0
        %1099 = vmatmul.mubr.bf16.gmra.mrb[0].mxu0 %v1028
        %v1100 = vpop.f32.mrb[0].mxu0
        %v1101 = vadd.f32 %v1009, %v1100
        %v1102 = vpop.f32.mrb[0].mxu0
        %v1103 = vpop.f32.mrb[0].mxu0
        %v1104 = vadd.f32 %v1009, %v1103
        %v1105 = vpop.f32.mrb[0].mxu0
        %1106 = vmatprep.mubr.bf16.mxu0 0
        %1107 = vmatmul.mubr.bf16.gmra.mrb[0].mxu0 %v1031
        %v1108 = vpop.f32.mrb[0].mxu0
        %v1109 = vadd.f32 %v1009, %v1108
        %v1110 = vpop.f32.mrb[0].mxu0
        %v1111 = vpop.f32.mrb[0].mxu0
        %v1112 = vadd.f32 %v1009, %v1111
        %v1113 = vpop.f32.mrb[0].mxu0
        %1114 = vmatprep.mubr.bf16.mxu0 0
        %1115 = vmatmul.mubr.bf16.gmra.mrb[0].mxu0 %v1034
        %v1116 = vpop.f32.mrb[0].mxu0
        %v1117 = vadd.f32 %v1009, %v1116
        %v1118 = vpop.f32.mrb[0].mxu0
        %v1119 = vpop.f32.mrb[0].mxu0
        %v1120 = vadd.f32 %v1009, %v1119
        %v1121 = vpop.f32.mrb[0].mxu0
        %1122 = vmatprep.mubr.bf16.mxu0 0
        %1123 = vmatmul.mubr.bf16.gmra.mrb[0].mxu0 %v1037
        %v1124 = vpop.f32.mrb[0].mxu0
        %v1125 = vadd.f32 %v1009, %v1124
        %v1126 = vpop.f32.mrb[0].mxu0
        %v1127 = vpop.f32.mrb[0].mxu0
        %v1128 = vadd.f32 %v1009, %v1127
        %v1129 = vpop.f32.mrb[0].mxu0
        %1130 = vmatprep.mubr.bf16.mxu0 0
        %1131 = vmatmul.mubr.bf16.gmra.mrb[0].mxu0 %v1040
        %v1132 = vpop.f32.mrb[0].mxu0
        %v1133 = vadd.f32 %v1009, %v1132
        %v1134 = vpop.f32.mrb[0].mxu0
        %v1135 = vpop.f32.mrb[0].mxu0
        %v1136 = vadd.f32 %v1009, %v1135
        %v1137 = vpop.f32.mrb[0].mxu0
        %1138 = vdwg.mxu0
        %v1139 = vmax.f32 %v1077, 0.0
        %v1140 = vmax.f32 %v1080, 0.0
        %v1141 = vmax.f32 %v1085, 0.0
        %v1142 = vmax.f32 %v1088, 0.0
        %v1143 = vmax.f32 %v1093, 0.0
        %v1144 = vmax.f32 %v1096, 0.0
        %v1145 = vmax.f32 %v1101, 0.0
        %v1146 = vmax.f32 %v1104, 0.0
        %v1147 = vmax.f32 %v1109, 0.0
        %v1148 = vmax.f32 %v1112, 0.0
        %v1149 = vmax.f32 %v1117, 0.0
        %v1150 = vmax.f32 %v1120, 0.0
        %v1151 = vmax.f32 %v1125, 0.0
        %v1152 = vmax.f32 %v1128, 0.0
        %v1153 = vmax.f32 %v1133, 0.0
        %v1154 = vmax.f32 %v1136, 0.0
        %v1155 = vpack.c.bf16 %v1140, %v1139
        %v1156 = vpack.c.bf16 %v1142, %v1141
        %v1157 = vpack.c.bf16 %v1144, %v1143
        %v1158 = vpack.c.bf16 %v1146, %v1145
        %v1159 = vpack.c.bf16 %v1148, %v1147
        %v1160 = vpack.c.bf16 %v1150, %v1149
        %v1161 = vpack.c.bf16 %v1152, %v1151
        %v1162 = vpack.c.bf16 %v1154, %v1153
        %v1163 = vld [vmem:[%s8] sm:$0xff]
        %v1164 = vld [vmem:[%s8 + $0x8] sm:$0xff]
        %v1165 = vld [vmem:[%s8 + $0x10] sm:$0xff]
        %v1166 = vld [vmem:[%s8 + $0x18] sm:$0xff]
        %v1167 = vld [vmem:[%s8 + $0x20] sm:$0xff]
        %v1168 = vld [vmem:[%s8 + $0x28] sm:$0xff]
        %v1169 = vld [vmem:[%s8 + $0x30] sm:$0xff]
        %v1170 = vld [vmem:[%s8 + $0x38] sm:$0xff]
        %v1171 = vld [vmem:[%s9] sm:$0xf]
        %v1173 = vlaneseq
        %v1174 = vshrl.u32 %v1173, 7
        %v1175 = vsub.s32 0, %v1174
        %v1176 = vrot.slane %v1171, %v1175
        %v1177 = vlaneseq
        %v1178 = vshrl.u32 %v1177, 7
        %v1179 = vsub.s32 1, %v1178
        %v1180 = vrot.slane %v1171, %v1179
        %v1181 = vlaneseq
        %v1182 = vshrl.u32 %v1181, 7
        %v1183 = vsub.s32 2, %v1182
        %v1184 = vrot.slane %v1171, %v1183
        %v1185 = vlaneseq
        %v1186 = vshrl.u32 %v1185, 7
        %v1187 = vsub.s32 3, %v1186
        %v1188 = vrot.slane %v1171, %v1187
        %v1201 = vunpack.c.l.b16 %v1163
        %v1202 = vunpack.c.h.b16 %v1163
        %v1203 = vunpack.c.l.b16 %v1164
        %v1204 = vunpack.c.h.b16 %v1164
        %v1205 = vunpack.c.l.b16 %v1165
        %v1206 = vunpack.c.h.b16 %v1165
        %v1207 = vunpack.c.l.b16 %v1166
        %v1208 = vunpack.c.h.b16 %v1166
        %v1209 = vunpack.c.l.b16 %v1167
        %v1210 = vunpack.c.h.b16 %v1167
        %v1211 = vunpack.c.l.b16 %v1168
        %v1212 = vunpack.c.h.b16 %v1168
        %v1213 = vunpack.c.l.b16 %v1169
        %v1214 = vunpack.c.h.b16 %v1169
        %v1215 = vunpack.c.l.b16 %v1170
        %v1216 = vunpack.c.h.b16 %v1170
        %v1217 = vpack.c.b16 %v1205, %v1201
        %v1218 = vpack.c.b16 %v1206, %v1202
        %v1219 = vpack.c.b16 %v1207, %v1203
        %v1220 = vpack.c.b16 %v1208, %v1204
        %v1221 = vpack.c.b16 %v1213, %v1209
        %v1222 = vpack.c.b16 %v1214, %v1210
        %v1223 = vpack.c.b16 %v1215, %v1211
        %v1224 = vpack.c.b16 %v1216, %v1212
        %v1234 = vsel %vm648, %v1155, 0
        %v1237 = vsel %vm648, %v1156, 0
        %v1240 = vsel %vm648, %v1157, 0
        %v1243 = vsel %vm648, %v1158, 0
        %v1246 = vsel %vm648, %v1159, 0
        %v1249 = vsel %vm648, %v1160, 0
        %v1252 = vsel %vm648, %v1161, 0
        %v1255 = vsel %vm648, %v1162, 0
        %1257 = vmatprep.subr.bf16.mxu0 %v1218
        %1258 = vmatpush1.bf16.msra.mxu0 %v1217
        %1259 = vmatprep.subr.bf16.mxu0 %v1222
        %1260 = vmatpush1.bf16.msra.mxu0 %v1221
        %1261 = vmatprep.subr.bf16.mxu0 0
        %1262 = vmatpush1.bf16.msra.mxu0 0
        %1263 = vmatprep.subr.bf16.mxu0 0
        %1264 = vmatpush1.bf16.msra.mxu0 0
        %1265 = vmatprep.subr.bf16.mxu0 0
        %1266 = vmatpush1.bf16.msra.mxu0 0
        %1267 = vmatprep.subr.bf16.mxu0 0
        %1268 = vmatpush1.bf16.msra.mxu0 0
        %1269 = vmatprep.subr.bf16.mxu0 0
        %1270 = vmatpush1.bf16.msra.mxu0 0
        %1271 = vmatprep.subr.bf16.mxu0 0
        %1272 = vmatpush1.bf16.msra.mxu0 0
        %1273 = vmatprep.subr.bf16.mxu0 0
        %1274 = vmatpush1.bf16.msra.mxu0 0
        %1275 = vmatprep.subr.bf16.mxu0 0
        %1276 = vmatpush1.bf16.msra.mxu0 0
        %1277 = vmatprep.subr.bf16.mxu0 0
        %1278 = vmatpush1.bf16.msra.mxu0 0
        %1279 = vmatprep.subr.bf16.mxu0 0
        %1280 = vmatpush1.bf16.msra.mxu0 0
        %1281 = vmatprep.subr.bf16.mxu0 0
        %1282 = vmatpush1.bf16.msra.mxu0 0
        %1283 = vmatprep.subr.bf16.mxu0 0
        %1284 = vmatpush1.bf16.msra.mxu0 0
        %1285 = vmatprep.subr.bf16.mxu0 0
        %1286 = vmatpush1.bf16.msra.mxu0 0
        %1287 = vmatprep.subr.bf16.mxu0 0
        %1288 = vmatpush1.bf16.msra.mxu0 0
        %1289 = vmatprep.mubr.bf16.mxu0 0
        %1290 = vmatmul.mubr.bf16.gmra.mrb[0].mxu0 %v1234
        %v1291 = vpop.f32.mrb[0].mxu0
        %v1292 = vadd.f32 %v1176, %v1291
        %v1293 = vpop.f32.mrb[0].mxu0
        %v1294 = vadd.f32 %v1180, %v1293
        %v1295 = vpop.f32.mrb[0].mxu0
        %v1296 = vadd.f32 %v1176, %v1295
        %v1297 = vpop.f32.mrb[0].mxu0
        %v1298 = vadd.f32 %v1180, %v1297
        %1299 = vmatprep.mubr.bf16.mxu0 0
        %1300 = vmatmul.mubr.bf16.gmra.mrb[0].mxu0 %v1237
        %v1301 = vpop.f32.mrb[0].mxu0
        %v1302 = vadd.f32 %v1176, %v1301
        %v1303 = vpop.f32.mrb[0].mxu0
        %v1304 = vadd.f32 %v1180, %v1303
        %v1305 = vpop.f32.mrb[0].mxu0
        %v1306 = vadd.f32 %v1176, %v1305
        %v1307 = vpop.f32.mrb[0].mxu0
        %v1308 = vadd.f32 %v1180, %v1307
        %1309 = vmatprep.mubr.bf16.mxu0 0
        %1310 = vmatmul.mubr.bf16.gmra.mrb[0].mxu0 %v1240
        %v1311 = vpop.f32.mrb[0].mxu0
        %v1312 = vadd.f32 %v1176, %v1311
        %v1313 = vpop.f32.mrb[0].mxu0
        %v1314 = vadd.f32 %v1180, %v1313
        %v1315 = vpop.f32.mrb[0].mxu0
        %v1316 = vadd.f32 %v1176, %v1315
        %v1317 = vpop.f32.mrb[0].mxu0
        %v1318 = vadd.f32 %v1180, %v1317
        %1319 = vmatprep.mubr.bf16.mxu0 0
        %1320 = vmatmul.mubr.bf16.gmra.mrb[0].mxu0 %v1243
        %v1321 = vpop.f32.mrb[0].mxu0
        %v1322 = vadd.f32 %v1176, %v1321
        %v1323 = vpop.f32.mrb[0].mxu0
        %v1324 = vadd.f32 %v1180, %v1323
        %v1325 = vpop.f32.mrb[0].mxu0
        %v1326 = vadd.f32 %v1176, %v1325
        %v1327 = vpop.f32.mrb[0].mxu0
        %v1328 = vadd.f32 %v1180, %v1327
        %1329 = vmatprep.mubr.bf16.mxu0 0
        %1330 = vmatmul.mubr.bf16.gmra.mrb[0].mxu0 %v1246
        %v1331 = vpop.f32.mrb[0].mxu0
        %v1332 = vadd.f32 %v1176, %v1331
        %v1333 = vpop.f32.mrb[0].mxu0
        %v1334 = vadd.f32 %v1180, %v1333
        %v1335 = vpop.f32.mrb[0].mxu0
        %v1336 = vadd.f32 %v1176, %v1335
        %v1337 = vpop.f32.mrb[0].mxu0
        %v1338 = vadd.f32 %v1180, %v1337
        %1339 = vmatprep.mubr.bf16.mxu0 0
        %1340 = vmatmul.mubr.bf16.gmra.mrb[0].mxu0 %v1249
        %v1341 = vpop.f32.mrb[0].mxu0
        %v1342 = vadd.f32 %v1176, %v1341
        %v1343 = vpop.f32.mrb[0].mxu0
        %v1344 = vadd.f32 %v1180, %v1343
        %v1345 = vpop.f32.mrb[0].mxu0
        %v1346 = vadd.f32 %v1176, %v1345
        %v1347 = vpop.f32.mrb[0].mxu0
        %v1348 = vadd.f32 %v1180, %v1347
        %1349 = vmatprep.mubr.bf16.mxu0 0
        %1350 = vmatmul.mubr.bf16.gmra.mrb[0].mxu0 %v1252
        %v1351 = vpop.f32.mrb[0].mxu0
        %v1352 = vadd.f32 %v1176, %v1351
        %v1353 = vpop.f32.mrb[0].mxu0
        %v1354 = vadd.f32 %v1180, %v1353
        %v1355 = vpop.f32.mrb[0].mxu0
        %v1356 = vadd.f32 %v1176, %v1355
        %v1357 = vpop.f32.mrb[0].mxu0
        %v1358 = vadd.f32 %v1180, %v1357
        %1359 = vmatprep.mubr.bf16.mxu0 0
        %1360 = vmatmul.mubr.bf16.gmra.mrb[0].mxu0 %v1255
        %v1361 = vpop.f32.mrb[0].mxu0
        %v1362 = vadd.f32 %v1176, %v1361
        %v1363 = vpop.f32.mrb[0].mxu0
        %v1364 = vadd.f32 %v1180, %v1363
        %v1365 = vpop.f32.mrb[0].mxu0
        %v1366 = vadd.f32 %v1176, %v1365
        %v1367 = vpop.f32.mrb[0].mxu0
        %v1368 = vadd.f32 %v1180, %v1367
        %1369 = vdwg.mxu0
        %1370 = vmatprep.subr.bf16.mxu0 %v1220
        %1371 = vmatpush1.bf16.msra.mxu0 %v1219
        %1372 = vmatprep.subr.bf16.mxu0 %v1224
        %1373 = vmatpush1.bf16.msra.mxu0 %v1223
        %1374 = vmatprep.subr.bf16.mxu0 0
        %1375 = vmatpush1.bf16.msra.mxu0 0
        %1376 = vmatprep.subr.bf16.mxu0 0
        %1377 = vmatpush1.bf16.msra.mxu0 0
        %1378 = vmatprep.subr.bf16.mxu0 0
        %1379 = vmatpush1.bf16.msra.mxu0 0
        %1380 = vmatprep.subr.bf16.mxu0 0
        %1381 = vmatpush1.bf16.msra.mxu0 0
        %1382 = vmatprep.subr.bf16.mxu0 0
        %1383 = vmatpush1.bf16.msra.mxu0 0
        %1384 = vmatprep.subr.bf16.mxu0 0
        %1385 = vmatpush1.bf16.msra.mxu0 0
        %1386 = vmatprep.subr.bf16.mxu0 0
        %1387 = vmatpush1.bf16.msra.mxu0 0
        %1388 = vmatprep.subr.bf16.mxu0 0
        %1389 = vmatpush1.bf16.msra.mxu0 0
        %1390 = vmatprep.subr.bf16.mxu0 0
        %1391 = vmatpush1.bf16.msra.mxu0 0
        %1392 = vmatprep.subr.bf16.mxu0 0
        %1393 = vmatpush1.bf16.msra.mxu0 0
        %1394 = vmatprep.subr.bf16.mxu0 0
        %1395 = vmatpush1.bf16.msra.mxu0 0
        %1396 = vmatprep.subr.bf16.mxu0 0
        %1397 = vmatpush1.bf16.msra.mxu0 0
        %1398 = vmatprep.subr.bf16.mxu0 0
        %1399 = vmatpush1.bf16.msra.mxu0 0
        %1400 = vmatprep.subr.bf16.mxu0 0
        %1401 = vmatpush1.bf16.msra.mxu0 0
        %1402 = vmatprep.mubr.bf16.mxu0 0
        %1403 = vmatmul.mubr.bf16.gmra.mrb[0].mxu0 %v1234
        %v1404 = vpop.f32.mrb[0].mxu0
        %v1405 = vadd.f32 %v1184, %v1404
        %v1406 = vpop.f32.mrb[0].mxu0
        %v1407 = vadd.f32 %v1188, %v1406
        %v1408 = vpop.f32.mrb[0].mxu0
        %v1409 = vadd.f32 %v1184, %v1408
        %v1410 = vpop.f32.mrb[0].mxu0
        %v1411 = vadd.f32 %v1188, %v1410
        %1412 = vmatprep.mubr.bf16.mxu0 0
        %1413 = vmatmul.mubr.bf16.gmra.mrb[0].mxu0 %v1237
        %v1414 = vpop.f32.mrb[0].mxu0
        %v1415 = vadd.f32 %v1184, %v1414
        %v1416 = vpop.f32.mrb[0].mxu0
        %v1417 = vadd.f32 %v1188, %v1416
        %v1418 = vpop.f32.mrb[0].mxu0
        %v1419 = vadd.f32 %v1184, %v1418
        %v1420 = vpop.f32.mrb[0].mxu0
        %v1421 = vadd.f32 %v1188, %v1420
        %1422 = vmatprep.mubr.bf16.mxu0 0
        %1423 = vmatmul.mubr.bf16.gmra.mrb[0].mxu0 %v1240
        %v1424 = vpop.f32.mrb[0].mxu0
        %v1425 = vadd.f32 %v1184, %v1424
        %v1426 = vpop.f32.mrb[0].mxu0
        %v1427 = vadd.f32 %v1188, %v1426
        %v1428 = vpop.f32.mrb[0].mxu0
        %v1429 = vadd.f32 %v1184, %v1428
        %v1430 = vpop.f32.mrb[0].mxu0
        %v1431 = vadd.f32 %v1188, %v1430
        %1432 = vmatprep.mubr.bf16.mxu0 0
        %1433 = vmatmul.mubr.bf16.gmra.mrb[0].mxu0 %v1243
        %v1434 = vpop.f32.mrb[0].mxu0
        %v1435 = vadd.f32 %v1184, %v1434
        %v1436 = vpop.f32.mrb[0].mxu0
        %v1437 = vadd.f32 %v1188, %v1436
        %v1438 = vpop.f32.mrb[0].mxu0
        %v1439 = vadd.f32 %v1184, %v1438
        %v1440 = vpop.f32.mrb[0].mxu0
        %v1441 = vadd.f32 %v1188, %v1440
        %1442 = vmatprep.mubr.bf16.mxu0 0
        %1443 = vmatmul.mubr.bf16.gmra.mrb[0].mxu0 %v1246
        %v1444 = vpop.f32.mrb[0].mxu0
        %v1445 = vadd.f32 %v1184, %v1444
        %v1446 = vpop.f32.mrb[0].mxu0
        %v1447 = vadd.f32 %v1188, %v1446
        %v1448 = vpop.f32.mrb[0].mxu0
        %v1449 = vadd.f32 %v1184, %v1448
        %v1450 = vpop.f32.mrb[0].mxu0
        %v1451 = vadd.f32 %v1188, %v1450
        %1452 = vmatprep.mubr.bf16.mxu0 0
        %1453 = vmatmul.mubr.bf16.gmra.mrb[0].mxu0 %v1249
        %v1454 = vpop.f32.mrb[0].mxu0
        %v1455 = vadd.f32 %v1184, %v1454
        %v1456 = vpop.f32.mrb[0].mxu0
        %v1457 = vadd.f32 %v1188, %v1456
        %v1458 = vpop.f32.mrb[0].mxu0
        %v1459 = vadd.f32 %v1184, %v1458
        %v1460 = vpop.f32.mrb[0].mxu0
        %v1461 = vadd.f32 %v1188, %v1460
        %1462 = vmatprep.mubr.bf16.mxu0 0
        %1463 = vmatmul.mubr.bf16.gmra.mrb[0].mxu0 %v1252
        %v1464 = vpop.f32.mrb[0].mxu0
        %v1465 = vadd.f32 %v1184, %v1464
        %v1466 = vpop.f32.mrb[0].mxu0
        %v1467 = vadd.f32 %v1188, %v1466
        %v1468 = vpop.f32.mrb[0].mxu0
        %v1469 = vadd.f32 %v1184, %v1468
        %v1470 = vpop.f32.mrb[0].mxu0
        %v1471 = vadd.f32 %v1188, %v1470
        %1472 = vmatprep.mubr.bf16.mxu0 0
        %1473 = vmatmul.mubr.bf16.gmra.mrb[0].mxu0 %v1255
        %v1474 = vpop.f32.mrb[0].mxu0
        %v1475 = vadd.f32 %v1184, %v1474
        %v1476 = vpop.f32.mrb[0].mxu0
        %v1477 = vadd.f32 %v1188, %v1476
        %v1478 = vpop.f32.mrb[0].mxu0
        %v1479 = vadd.f32 %v1184, %v1478
        %v1480 = vpop.f32.mrb[0].mxu0
        %v1481 = vadd.f32 %v1188, %v1480
        %1482 = vdwg.mxu0
        %1499 = vrot.lane.b32.xlu0 %v1292, 64
        %v1500 = vpop.permute.xlu0 %1499
        %1501 = vrot.lane.b32.xlu0 %v1296, 64
        %v1502 = vpop.permute.xlu0 %1501
        %1503 = vrot.lane.b32.xlu0 %v1302, 64
        %v1504 = vpop.permute.xlu0 %1503
        %1505 = vrot.lane.b32.xlu0 %v1306, 64
        %v1506 = vpop.permute.xlu0 %1505
        %1507 = vrot.lane.b32.xlu0 %v1312, 64
        %v1508 = vpop.permute.xlu0 %1507
        %1509 = vrot.lane.b32.xlu0 %v1316, 64
        %v1510 = vpop.permute.xlu0 %1509
        %1511 = vrot.lane.b32.xlu0 %v1322, 64
        %v1512 = vpop.permute.xlu0 %1511
        %1513 = vrot.lane.b32.xlu0 %v1326, 64
        %v1514 = vpop.permute.xlu0 %1513
        %1515 = vrot.lane.b32.xlu0 %v1332, 64
        %v1516 = vpop.permute.xlu0 %1515
        %1517 = vrot.lane.b32.xlu0 %v1336, 64
        %v1518 = vpop.permute.xlu0 %1517
        %1519 = vrot.lane.b32.xlu0 %v1342, 64
        %v1520 = vpop.permute.xlu0 %1519
        %1521 = vrot.lane.b32.xlu0 %v1346, 64
        %v1522 = vpop.permute.xlu0 %1521
        %1523 = vrot.lane.b32.xlu0 %v1352, 64
        %v1524 = vpop.permute.xlu0 %1523
        %1525 = vrot.lane.b32.xlu0 %v1356, 64
        %v1526 = vpop.permute.xlu0 %1525
        %1527 = vrot.lane.b32.xlu0 %v1362, 64
        %v1528 = vpop.permute.xlu0 %1527
        %1529 = vrot.lane.b32.xlu0 %v1366, 64
        %v1530 = vpop.permute.xlu0 %1529
        %v1547 = vmax.f32 %v1292, %v1500
        %v1548 = vmax.f32 %v1296, %v1502
        %v1549 = vmax.f32 %v1302, %v1504
        %v1550 = vmax.f32 %v1306, %v1506
        %v1551 = vmax.f32 %v1312, %v1508
        %v1552 = vmax.f32 %v1316, %v1510
        %v1553 = vmax.f32 %v1322, %v1512
        %v1554 = vmax.f32 %v1326, %v1514
        %v1555 = vmax.f32 %v1332, %v1516
        %v1556 = vmax.f32 %v1336, %v1518
        %v1557 = vmax.f32 %v1342, %v1520
        %v1558 = vmax.f32 %v1346, %v1522
        %v1559 = vmax.f32 %v1352, %v1524
        %v1560 = vmax.f32 %v1356, %v1526
        %v1561 = vmax.f32 %v1362, %v1528
        %v1562 = vmax.f32 %v1366, %v1530
        %v1563 = vmax.f32 %v1547, %v1294
        %v1564 = vmax.f32 %v1548, %v1298
        %v1565 = vmax.f32 %v1549, %v1304
        %v1566 = vmax.f32 %v1550, %v1308
        %v1567 = vmax.f32 %v1551, %v1314
        %v1568 = vmax.f32 %v1552, %v1318
        %v1569 = vmax.f32 %v1553, %v1324
        %v1570 = vmax.f32 %v1554, %v1328
        %v1571 = vmax.f32 %v1555, %v1334
        %v1572 = vmax.f32 %v1556, %v1338
        %v1573 = vmax.f32 %v1557, %v1344
        %v1574 = vmax.f32 %v1558, %v1348
        %v1575 = vmax.f32 %v1559, %v1354
        %v1576 = vmax.f32 %v1560, %v1358
        %v1577 = vmax.f32 %v1561, %v1364
        %v1578 = vmax.f32 %v1562, %v1368
        %1595 = vrot.lane.b32.xlu0 %v1294, 64
        %v1596 = vpop.permute.xlu0 %1595
        %1597 = vrot.lane.b32.xlu0 %v1298, 64
        %v1598 = vpop.permute.xlu0 %1597
        %1599 = vrot.lane.b32.xlu0 %v1304, 64
        %v1600 = vpop.permute.xlu0 %1599
        %1601 = vrot.lane.b32.xlu0 %v1308, 64
        %v1602 = vpop.permute.xlu0 %1601
        %1603 = vrot.lane.b32.xlu0 %v1314, 64
        %v1604 = vpop.permute.xlu0 %1603
        %1605 = vrot.lane.b32.xlu0 %v1318, 64
        %v1606 = vpop.permute.xlu0 %1605
        %1607 = vrot.lane.b32.xlu0 %v1324, 64
        %v1608 = vpop.permute.xlu0 %1607
        %1609 = vrot.lane.b32.xlu0 %v1328, 64
        %v1610 = vpop.permute.xlu0 %1609
        %1611 = vrot.lane.b32.xlu0 %v1334, 64
        %v1612 = vpop.permute.xlu0 %1611
        %1613 = vrot.lane.b32.xlu0 %v1338, 64
        %v1614 = vpop.permute.xlu0 %1613
        %1615 = vrot.lane.b32.xlu0 %v1344, 64
        %v1616 = vpop.permute.xlu0 %1615
        %1617 = vrot.lane.b32.xlu0 %v1348, 64
        %v1618 = vpop.permute.xlu0 %1617
        %1619 = vrot.lane.b32.xlu0 %v1354, 64
        %v1620 = vpop.permute.xlu0 %1619
        %1621 = vrot.lane.b32.xlu0 %v1358, 64
        %v1622 = vpop.permute.xlu0 %1621
        %1623 = vrot.lane.b32.xlu0 %v1364, 64
        %v1624 = vpop.permute.xlu0 %1623
        %1625 = vrot.lane.b32.xlu0 %v1368, 64
        %v1626 = vpop.permute.xlu0 %1625
        %v1643 = vmax.f32 %v1563, %v1596
        %v1644 = vmax.f32 %v1564, %v1598
        %v1645 = vmax.f32 %v1565, %v1600
        %v1646 = vmax.f32 %v1566, %v1602
        %v1647 = vmax.f32 %v1567, %v1604
        %v1648 = vmax.f32 %v1568, %v1606
        %v1649 = vmax.f32 %v1569, %v1608
        %v1650 = vmax.f32 %v1570, %v1610
        %v1651 = vmax.f32 %v1571, %v1612
        %v1652 = vmax.f32 %v1572, %v1614
        %v1653 = vmax.f32 %v1573, %v1616
        %v1654 = vmax.f32 %v1574, %v1618
        %v1655 = vmax.f32 %v1575, %v1620
        %v1656 = vmax.f32 %v1576, %v1622
        %v1657 = vmax.f32 %v1577, %v1624
        %v1658 = vmax.f32 %v1578, %v1626
        %v1659 = vmax.f32 %v1643, %v1405
        %v1660 = vmax.f32 %v1644, %v1409
        %v1661 = vmax.f32 %v1645, %v1415
        %v1662 = vmax.f32 %v1646, %v1419
        %v1663 = vmax.f32 %v1647, %v1425
        %v1664 = vmax.f32 %v1648, %v1429
        %v1665 = vmax.f32 %v1649, %v1435
        %v1666 = vmax.f32 %v1650, %v1439
        %v1667 = vmax.f32 %v1651, %v1445
        %v1668 = vmax.f32 %v1652, %v1449
        %v1669 = vmax.f32 %v1653, %v1455
        %v1670 = vmax.f32 %v1654, %v1459
        %v1671 = vmax.f32 %v1655, %v1465
        %v1672 = vmax.f32 %v1656, %v1469
        %v1673 = vmax.f32 %v1657, %v1475
        %v1674 = vmax.f32 %v1658, %v1479
        %1691 = vrot.lane.b32.xlu0 %v1405, 64
        %v1692 = vpop.permute.xlu0 %1691
        %1693 = vrot.lane.b32.xlu0 %v1409, 64
        %v1694 = vpop.permute.xlu0 %1693
        %1695 = vrot.lane.b32.xlu0 %v1415, 64
        %v1696 = vpop.permute.xlu0 %1695
        %1697 = vrot.lane.b32.xlu0 %v1419, 64
        %v1698 = vpop.permute.xlu0 %1697
        %1699 = vrot.lane.b32.xlu0 %v1425, 64
        %v1700 = vpop.permute.xlu0 %1699
        %1701 = vrot.lane.b32.xlu0 %v1429, 64
        %v1702 = vpop.permute.xlu0 %1701
        %1703 = vrot.lane.b32.xlu0 %v1435, 64
        %v1704 = vpop.permute.xlu0 %1703
        %1705 = vrot.lane.b32.xlu0 %v1439, 64
        %v1706 = vpop.permute.xlu0 %1705
        %1707 = vrot.lane.b32.xlu0 %v1445, 64
        %v1708 = vpop.permute.xlu0 %1707
        %1709 = vrot.lane.b32.xlu0 %v1449, 64
        %v1710 = vpop.permute.xlu0 %1709
        %1711 = vrot.lane.b32.xlu0 %v1455, 64
        %v1712 = vpop.permute.xlu0 %1711
        %1713 = vrot.lane.b32.xlu0 %v1459, 64
        %v1714 = vpop.permute.xlu0 %1713
        %1715 = vrot.lane.b32.xlu0 %v1465, 64
        %v1716 = vpop.permute.xlu0 %1715
        %1717 = vrot.lane.b32.xlu0 %v1469, 64
        %v1718 = vpop.permute.xlu0 %1717
        %1719 = vrot.lane.b32.xlu0 %v1475, 64
        %v1720 = vpop.permute.xlu0 %1719
        %1721 = vrot.lane.b32.xlu0 %v1479, 64
        %v1722 = vpop.permute.xlu0 %1721
        %v1739 = vmax.f32 %v1659, %v1692
        %v1740 = vmax.f32 %v1660, %v1694
        %v1741 = vmax.f32 %v1661, %v1696
        %v1742 = vmax.f32 %v1662, %v1698
        %v1743 = vmax.f32 %v1663, %v1700
        %v1744 = vmax.f32 %v1664, %v1702
        %v1745 = vmax.f32 %v1665, %v1704
        %v1746 = vmax.f32 %v1666, %v1706
        %v1747 = vmax.f32 %v1667, %v1708
        %v1748 = vmax.f32 %v1668, %v1710
        %v1749 = vmax.f32 %v1669, %v1712
        %v1750 = vmax.f32 %v1670, %v1714
        %v1751 = vmax.f32 %v1671, %v1716
        %v1752 = vmax.f32 %v1672, %v1718
        %v1753 = vmax.f32 %v1673, %v1720
        %v1754 = vmax.f32 %v1674, %v1722
        %v1755 = vmax.f32 %v1739, %v1407
        %v1756 = vmax.f32 %v1740, %v1411
        %v1757 = vmax.f32 %v1741, %v1417
        %v1758 = vmax.f32 %v1742, %v1421
        %v1759 = vmax.f32 %v1743, %v1427
        %v1760 = vmax.f32 %v1744, %v1431
        %v1761 = vmax.f32 %v1745, %v1437
        %v1762 = vmax.f32 %v1746, %v1441
        %v1763 = vmax.f32 %v1747, %v1447
        %v1764 = vmax.f32 %v1748, %v1451
        %v1765 = vmax.f32 %v1749, %v1457
        %v1766 = vmax.f32 %v1750, %v1461
        %v1767 = vmax.f32 %v1751, %v1467
        %v1768 = vmax.f32 %v1752, %v1471
        %v1769 = vmax.f32 %v1753, %v1477
        %v1770 = vmax.f32 %v1754, %v1481
        %1787 = vrot.lane.b32.xlu0 %v1407, 64
        %v1788 = vpop.permute.xlu0 %1787
        %1789 = vrot.lane.b32.xlu0 %v1411, 64
        %v1790 = vpop.permute.xlu0 %1789
        %1791 = vrot.lane.b32.xlu0 %v1417, 64
        %v1792 = vpop.permute.xlu0 %1791
        %1793 = vrot.lane.b32.xlu0 %v1421, 64
        %v1794 = vpop.permute.xlu0 %1793
        %1795 = vrot.lane.b32.xlu0 %v1427, 64
        %v1796 = vpop.permute.xlu0 %1795
        %1797 = vrot.lane.b32.xlu0 %v1431, 64
        %v1798 = vpop.permute.xlu0 %1797
        %1799 = vrot.lane.b32.xlu0 %v1437, 64
        %v1800 = vpop.permute.xlu0 %1799
        %1801 = vrot.lane.b32.xlu0 %v1441, 64
        %v1802 = vpop.permute.xlu0 %1801
        %1803 = vrot.lane.b32.xlu0 %v1447, 64
        %v1804 = vpop.permute.xlu0 %1803
        %1805 = vrot.lane.b32.xlu0 %v1451, 64
        %v1806 = vpop.permute.xlu0 %1805
        %1807 = vrot.lane.b32.xlu0 %v1457, 64
        %v1808 = vpop.permute.xlu0 %1807
        %1809 = vrot.lane.b32.xlu0 %v1461, 64
        %v1810 = vpop.permute.xlu0 %1809
        %1811 = vrot.lane.b32.xlu0 %v1467, 64
        %v1812 = vpop.permute.xlu0 %1811
        %1813 = vrot.lane.b32.xlu0 %v1471, 64
        %v1814 = vpop.permute.xlu0 %1813
        %1815 = vrot.lane.b32.xlu0 %v1477, 64
        %v1816 = vpop.permute.xlu0 %1815
        %1817 = vrot.lane.b32.xlu0 %v1481, 64
        %v1818 = vpop.permute.xlu0 %1817
        %v1835 = vmax.f32 %v1755, %v1788
        %v1836 = vmax.f32 %v1756, %v1790
        %v1837 = vmax.f32 %v1757, %v1792
        %v1838 = vmax.f32 %v1758, %v1794
        %v1839 = vmax.f32 %v1759, %v1796
        %v1840 = vmax.f32 %v1760, %v1798
        %v1841 = vmax.f32 %v1761, %v1800
        %v1842 = vmax.f32 %v1762, %v1802
        %v1843 = vmax.f32 %v1763, %v1804
        %v1844 = vmax.f32 %v1764, %v1806
        %v1845 = vmax.f32 %v1765, %v1808
        %v1846 = vmax.f32 %v1766, %v1810
        %v1847 = vmax.f32 %v1767, %v1812
        %v1848 = vmax.f32 %v1768, %v1814
        %v1849 = vmax.f32 %v1769, %v1816
        %v1850 = vmax.f32 %v1770, %v1818
        %v1851 = vsub.f32 %v1292, %v1835
        %v1852 = vsub.f32 %v1296, %v1836
        %v1853 = vsub.f32 %v1302, %v1837
        %v1854 = vsub.f32 %v1306, %v1838
        %v1855 = vsub.f32 %v1312, %v1839
        %v1856 = vsub.f32 %v1316, %v1840
        %v1857 = vsub.f32 %v1322, %v1841
        %v1858 = vsub.f32 %v1326, %v1842
        %v1859 = vsub.f32 %v1332, %v1843
        %v1860 = vsub.f32 %v1336, %v1844
        %v1861 = vsub.f32 %v1342, %v1845
        %v1862 = vsub.f32 %v1346, %v1846
        %v1863 = vsub.f32 %v1352, %v1847
        %v1864 = vsub.f32 %v1356, %v1848
        %v1865 = vsub.f32 %v1362, %v1849
        %v1866 = vsub.f32 %v1366, %v1850
        %v1867 = vmul.f32 %v1851, 1.442695
        %v1868 = vpow.pop %v1867
        %v1869 = vmul.f32 %v1852, 1.442695
        %v1870 = vpow.pop %v1869
        %v1871 = vmul.f32 %v1853, 1.442695
        %v1872 = vpow.pop %v1871
        %v1873 = vmul.f32 %v1854, 1.442695
        %v1874 = vpow.pop %v1873
        %v1875 = vmul.f32 %v1855, 1.442695
        %v1876 = vpow.pop %v1875
        %v1877 = vmul.f32 %v1856, 1.442695
        %v1878 = vpow.pop %v1877
        %v1879 = vmul.f32 %v1857, 1.442695
        %v1880 = vpow.pop %v1879
        %v1881 = vmul.f32 %v1858, 1.442695
        %v1882 = vpow.pop %v1881
        %v1883 = vmul.f32 %v1859, 1.442695
        %v1884 = vpow.pop %v1883
        %v1885 = vmul.f32 %v1860, 1.442695
        %v1886 = vpow.pop %v1885
        %v1887 = vmul.f32 %v1861, 1.442695
        %v1888 = vpow.pop %v1887
        %v1889 = vmul.f32 %v1862, 1.442695
        %v1890 = vpow.pop %v1889
        %v1891 = vmul.f32 %v1863, 1.442695
        %v1892 = vpow.pop %v1891
        %v1893 = vmul.f32 %v1864, 1.442695
        %v1894 = vpow.pop %v1893
        %v1895 = vmul.f32 %v1865, 1.442695
        %v1896 = vpow.pop %v1895
        %v1897 = vmul.f32 %v1866, 1.442695
        %v1898 = vpow.pop %v1897
        %1915 = vrot.lane.b32.xlu0 %v1835, 64
        %v1916 = vpop.permute.xlu0 %1915
        %1917 = vrot.lane.b32.xlu0 %v1836, 64
        %v1918 = vpop.permute.xlu0 %1917
        %1919 = vrot.lane.b32.xlu0 %v1837, 64
        %v1920 = vpop.permute.xlu0 %1919
        %1921 = vrot.lane.b32.xlu0 %v1838, 64
        %v1922 = vpop.permute.xlu0 %1921
        %1923 = vrot.lane.b32.xlu0 %v1839, 64
        %v1924 = vpop.permute.xlu0 %1923
        %1925 = vrot.lane.b32.xlu0 %v1840, 64
        %v1926 = vpop.permute.xlu0 %1925
        %1927 = vrot.lane.b32.xlu0 %v1841, 64
        %v1928 = vpop.permute.xlu0 %1927
        %1929 = vrot.lane.b32.xlu0 %v1842, 64
        %v1930 = vpop.permute.xlu0 %1929
        %1931 = vrot.lane.b32.xlu0 %v1843, 64
        %v1932 = vpop.permute.xlu0 %1931
        %1933 = vrot.lane.b32.xlu0 %v1844, 64
        %v1934 = vpop.permute.xlu0 %1933
        %1935 = vrot.lane.b32.xlu0 %v1845, 64
        %v1936 = vpop.permute.xlu0 %1935
        %1937 = vrot.lane.b32.xlu0 %v1846, 64
        %v1938 = vpop.permute.xlu0 %1937
        %1939 = vrot.lane.b32.xlu0 %v1847, 64
        %v1940 = vpop.permute.xlu0 %1939
        %1941 = vrot.lane.b32.xlu0 %v1848, 64
        %v1942 = vpop.permute.xlu0 %1941
        %1943 = vrot.lane.b32.xlu0 %v1849, 64
        %v1944 = vpop.permute.xlu0 %1943
        %1945 = vrot.lane.b32.xlu0 %v1850, 64
        %v1946 = vpop.permute.xlu0 %1945
        %v1963 = vsub.f32 %v1292, %v1916
        %v1964 = vsub.f32 %v1296, %v1918
        %v1965 = vsub.f32 %v1302, %v1920
        %v1966 = vsub.f32 %v1306, %v1922
        %v1967 = vsub.f32 %v1312, %v1924
        %v1968 = vsub.f32 %v1316, %v1926
        %v1969 = vsub.f32 %v1322, %v1928
        %v1970 = vsub.f32 %v1326, %v1930
        %v1971 = vsub.f32 %v1332, %v1932
        %v1972 = vsub.f32 %v1336, %v1934
        %v1973 = vsub.f32 %v1342, %v1936
        %v1974 = vsub.f32 %v1346, %v1938
        %v1975 = vsub.f32 %v1352, %v1940
        %v1976 = vsub.f32 %v1356, %v1942
        %v1977 = vsub.f32 %v1362, %v1944
        %v1978 = vsub.f32 %v1366, %v1946
        %v1979 = vmul.f32 %v1963, 1.442695
        %v1980 = vpow.pop %v1979
        %v1981 = vmul.f32 %v1964, 1.442695
        %v1982 = vpow.pop %v1981
        %v1983 = vmul.f32 %v1965, 1.442695
        %v1984 = vpow.pop %v1983
        %v1985 = vmul.f32 %v1966, 1.442695
        %v1986 = vpow.pop %v1985
        %v1987 = vmul.f32 %v1967, 1.442695
        %v1988 = vpow.pop %v1987
        %v1989 = vmul.f32 %v1968, 1.442695
        %v1990 = vpow.pop %v1989
        %v1991 = vmul.f32 %v1969, 1.442695
        %v1992 = vpow.pop %v1991
        %v1993 = vmul.f32 %v1970, 1.442695
        %v1994 = vpow.pop %v1993
        %v1995 = vmul.f32 %v1971, 1.442695
        %v1996 = vpow.pop %v1995
        %v1997 = vmul.f32 %v1972, 1.442695
        %v1998 = vpow.pop %v1997
        %v1999 = vmul.f32 %v1973, 1.442695
        %v2000 = vpow.pop %v1999
        %v2001 = vmul.f32 %v1974, 1.442695
        %v2002 = vpow.pop %v2001
        %v2003 = vmul.f32 %v1975, 1.442695
        %v2004 = vpow.pop %v2003
        %v2005 = vmul.f32 %v1976, 1.442695
        %v2006 = vpow.pop %v2005
        %v2007 = vmul.f32 %v1977, 1.442695
        %v2008 = vpow.pop %v2007
        %v2009 = vmul.f32 %v1978, 1.442695
        %v2010 = vpow.pop %v2009
        %v2011 = vsub.f32 %v1294, %v1835
        %v2012 = vsub.f32 %v1298, %v1836
        %v2013 = vsub.f32 %v1304, %v1837
        %v2014 = vsub.f32 %v1308, %v1838
        %v2015 = vsub.f32 %v1314, %v1839
        %v2016 = vsub.f32 %v1318, %v1840
        %v2017 = vsub.f32 %v1324, %v1841
        %v2018 = vsub.f32 %v1328, %v1842
        %v2019 = vsub.f32 %v1334, %v1843
        %v2020 = vsub.f32 %v1338, %v1844
        %v2021 = vsub.f32 %v1344, %v1845
        %v2022 = vsub.f32 %v1348, %v1846
        %v2023 = vsub.f32 %v1354, %v1847
        %v2024 = vsub.f32 %v1358, %v1848
        %v2025 = vsub.f32 %v1364, %v1849
        %v2026 = vsub.f32 %v1368, %v1850
        %v2027 = vmul.f32 %v2011, 1.442695
        %v2028 = vpow.pop %v2027
        %v2029 = vmul.f32 %v2012, 1.442695
        %v2030 = vpow.pop %v2029
        %v2031 = vmul.f32 %v2013, 1.442695
        %v2032 = vpow.pop %v2031
        %v2033 = vmul.f32 %v2014, 1.442695
        %v2034 = vpow.pop %v2033
        %v2035 = vmul.f32 %v2015, 1.442695
        %v2036 = vpow.pop %v2035
        %v2037 = vmul.f32 %v2016, 1.442695
        %v2038 = vpow.pop %v2037
        %v2039 = vmul.f32 %v2017, 1.442695
        %v2040 = vpow.pop %v2039
        %v2041 = vmul.f32 %v2018, 1.442695
        %v2042 = vpow.pop %v2041
        %v2043 = vmul.f32 %v2019, 1.442695
        %v2044 = vpow.pop %v2043
        %v2045 = vmul.f32 %v2020, 1.442695
        %v2046 = vpow.pop %v2045
        %v2047 = vmul.f32 %v2021, 1.442695
        %v2048 = vpow.pop %v2047
        %v2049 = vmul.f32 %v2022, 1.442695
        %v2050 = vpow.pop %v2049
        %v2051 = vmul.f32 %v2023, 1.442695
        %v2052 = vpow.pop %v2051
        %v2053 = vmul.f32 %v2024, 1.442695
        %v2054 = vpow.pop %v2053
        %v2055 = vmul.f32 %v2025, 1.442695
        %v2056 = vpow.pop %v2055
        %v2057 = vmul.f32 %v2026, 1.442695
        %v2058 = vpow.pop %v2057
        %v2059 = vsub.f32 %v1294, %v1916
        %v2060 = vsub.f32 %v1298, %v1918
        %v2061 = vsub.f32 %v1304, %v1920
        %v2062 = vsub.f32 %v1308, %v1922
        %v2063 = vsub.f32 %v1314, %v1924
        %v2064 = vsub.f32 %v1318, %v1926
        %v2065 = vsub.f32 %v1324, %v1928
        %v2066 = vsub.f32 %v1328, %v1930
        %v2067 = vsub.f32 %v1334, %v1932
        %v2068 = vsub.f32 %v1338, %v1934
        %v2069 = vsub.f32 %v1344, %v1936
        %v2070 = vsub.f32 %v1348, %v1938
        %v2071 = vsub.f32 %v1354, %v1940
        %v2072 = vsub.f32 %v1358, %v1942
        %v2073 = vsub.f32 %v1364, %v1944
        %v2074 = vsub.f32 %v1368, %v1946
        %v2075 = vmul.f32 %v2059, 1.442695
        %v2076 = vpow.pop %v2075
        %v2077 = vmul.f32 %v2060, 1.442695
        %v2078 = vpow.pop %v2077
        %v2079 = vmul.f32 %v2061, 1.442695
        %v2080 = vpow.pop %v2079
        %v2081 = vmul.f32 %v2062, 1.442695
        %v2082 = vpow.pop %v2081
        %v2083 = vmul.f32 %v2063, 1.442695
        %v2084 = vpow.pop %v2083
        %v2085 = vmul.f32 %v2064, 1.442695
        %v2086 = vpow.pop %v2085
        %v2087 = vmul.f32 %v2065, 1.442695
        %v2088 = vpow.pop %v2087
        %v2089 = vmul.f32 %v2066, 1.442695
        %v2090 = vpow.pop %v2089
        %v2091 = vmul.f32 %v2067, 1.442695
        %v2092 = vpow.pop %v2091
        %v2093 = vmul.f32 %v2068, 1.442695
        %v2094 = vpow.pop %v2093
        %v2095 = vmul.f32 %v2069, 1.442695
        %v2096 = vpow.pop %v2095
        %v2097 = vmul.f32 %v2070, 1.442695
        %v2098 = vpow.pop %v2097
        %v2099 = vmul.f32 %v2071, 1.442695
        %v2100 = vpow.pop %v2099
        %v2101 = vmul.f32 %v2072, 1.442695
        %v2102 = vpow.pop %v2101
        %v2103 = vmul.f32 %v2073, 1.442695
        %v2104 = vpow.pop %v2103
        %v2105 = vmul.f32 %v2074, 1.442695
        %v2106 = vpow.pop %v2105
        %v2107 = vsub.f32 %v1405, %v1835
        %v2108 = vsub.f32 %v1409, %v1836
        %v2109 = vsub.f32 %v1415, %v1837
        %v2110 = vsub.f32 %v1419, %v1838
        %v2111 = vsub.f32 %v1425, %v1839
        %v2112 = vsub.f32 %v1429, %v1840
        %v2113 = vsub.f32 %v1435, %v1841
        %v2114 = vsub.f32 %v1439, %v1842
        %v2115 = vsub.f32 %v1445, %v1843
        %v2116 = vsub.f32 %v1449, %v1844
        %v2117 = vsub.f32 %v1455, %v1845
        %v2118 = vsub.f32 %v1459, %v1846
        %v2119 = vsub.f32 %v1465, %v1847
        %v2120 = vsub.f32 %v1469, %v1848
        %v2121 = vsub.f32 %v1475, %v1849
        %v2122 = vsub.f32 %v1479, %v1850
        %v2123 = vmul.f32 %v2107, 1.442695
        %v2124 = vpow.pop %v2123
        %v2125 = vmul.f32 %v2108, 1.442695
        %v2126 = vpow.pop %v2125
        %v2127 = vmul.f32 %v2109, 1.442695
        %v2128 = vpow.pop %v2127
        %v2129 = vmul.f32 %v2110, 1.442695
        %v2130 = vpow.pop %v2129
        %v2131 = vmul.f32 %v2111, 1.442695
        %v2132 = vpow.pop %v2131
        %v2133 = vmul.f32 %v2112, 1.442695
        %v2134 = vpow.pop %v2133
        %v2135 = vmul.f32 %v2113, 1.442695
        %v2136 = vpow.pop %v2135
        %v2137 = vmul.f32 %v2114, 1.442695
        %v2138 = vpow.pop %v2137
        %v2139 = vmul.f32 %v2115, 1.442695
        %v2140 = vpow.pop %v2139
        %v2141 = vmul.f32 %v2116, 1.442695
        %v2142 = vpow.pop %v2141
        %v2143 = vmul.f32 %v2117, 1.442695
        %v2144 = vpow.pop %v2143
        %v2145 = vmul.f32 %v2118, 1.442695
        %v2146 = vpow.pop %v2145
        %v2147 = vmul.f32 %v2119, 1.442695
        %v2148 = vpow.pop %v2147
        %v2149 = vmul.f32 %v2120, 1.442695
        %v2150 = vpow.pop %v2149
        %v2151 = vmul.f32 %v2121, 1.442695
        %v2152 = vpow.pop %v2151
        %v2153 = vmul.f32 %v2122, 1.442695
        %v2154 = vpow.pop %v2153
        %v2155 = vsub.f32 %v1405, %v1916
        %v2156 = vsub.f32 %v1409, %v1918
        %v2157 = vsub.f32 %v1415, %v1920
        %v2158 = vsub.f32 %v1419, %v1922
        %v2159 = vsub.f32 %v1425, %v1924
        %v2160 = vsub.f32 %v1429, %v1926
        %v2161 = vsub.f32 %v1435, %v1928
        %v2162 = vsub.f32 %v1439, %v1930
        %v2163 = vsub.f32 %v1445, %v1932
        %v2164 = vsub.f32 %v1449, %v1934
        %v2165 = vsub.f32 %v1455, %v1936
        %v2166 = vsub.f32 %v1459, %v1938
        %v2167 = vsub.f32 %v1465, %v1940
        %v2168 = vsub.f32 %v1469, %v1942
        %v2169 = vsub.f32 %v1475, %v1944
        %v2170 = vsub.f32 %v1479, %v1946
        %v2171 = vmul.f32 %v2155, 1.442695
        %v2172 = vpow.pop %v2171
        %v2173 = vmul.f32 %v2156, 1.442695
        %v2174 = vpow.pop %v2173
        %v2175 = vmul.f32 %v2157, 1.442695
        %v2176 = vpow.pop %v2175
        %v2177 = vmul.f32 %v2158, 1.442695
        %v2178 = vpow.pop %v2177
        %v2179 = vmul.f32 %v2159, 1.442695
        %v2180 = vpow.pop %v2179
        %v2181 = vmul.f32 %v2160, 1.442695
        %v2182 = vpow.pop %v2181
        %v2183 = vmul.f32 %v2161, 1.442695
        %v2184 = vpow.pop %v2183
        %v2185 = vmul.f32 %v2162, 1.442695
        %v2186 = vpow.pop %v2185
        %v2187 = vmul.f32 %v2163, 1.442695
        %v2188 = vpow.pop %v2187
        %v2189 = vmul.f32 %v2164, 1.442695
        %v2190 = vpow.pop %v2189
        %v2191 = vmul.f32 %v2165, 1.442695
        %v2192 = vpow.pop %v2191
        %v2193 = vmul.f32 %v2166, 1.442695
        %v2194 = vpow.pop %v2193
        %v2195 = vmul.f32 %v2167, 1.442695
        %v2196 = vpow.pop %v2195
        %v2197 = vmul.f32 %v2168, 1.442695
        %v2198 = vpow.pop %v2197
        %v2199 = vmul.f32 %v2169, 1.442695
        %v2200 = vpow.pop %v2199
        %v2201 = vmul.f32 %v2170, 1.442695
        %v2202 = vpow.pop %v2201
        %v2203 = vsub.f32 %v1407, %v1835
        %v2204 = vsub.f32 %v1411, %v1836
        %v2205 = vsub.f32 %v1417, %v1837
        %v2206 = vsub.f32 %v1421, %v1838
        %v2207 = vsub.f32 %v1427, %v1839
        %v2208 = vsub.f32 %v1431, %v1840
        %v2209 = vsub.f32 %v1437, %v1841
        %v2210 = vsub.f32 %v1441, %v1842
        %v2211 = vsub.f32 %v1447, %v1843
        %v2212 = vsub.f32 %v1451, %v1844
        %v2213 = vsub.f32 %v1457, %v1845
        %v2214 = vsub.f32 %v1461, %v1846
        %v2215 = vsub.f32 %v1467, %v1847
        %v2216 = vsub.f32 %v1471, %v1848
        %v2217 = vsub.f32 %v1477, %v1849
        %v2218 = vsub.f32 %v1481, %v1850
        %v2219 = vmul.f32 %v2203, 1.442695
        %v2220 = vpow.pop %v2219
        %v2221 = vmul.f32 %v2204, 1.442695
        %v2222 = vpow.pop %v2221
        %v2223 = vmul.f32 %v2205, 1.442695
        %v2224 = vpow.pop %v2223
        %v2225 = vmul.f32 %v2206, 1.442695
        %v2226 = vpow.pop %v2225
        %v2227 = vmul.f32 %v2207, 1.442695
        %v2228 = vpow.pop %v2227
        %v2229 = vmul.f32 %v2208, 1.442695
        %v2230 = vpow.pop %v2229
        %v2231 = vmul.f32 %v2209, 1.442695
        %v2232 = vpow.pop %v2231
        %v2233 = vmul.f32 %v2210, 1.442695
        %v2234 = vpow.pop %v2233
        %v2235 = vmul.f32 %v2211, 1.442695
        %v2236 = vpow.pop %v2235
        %v2237 = vmul.f32 %v2212, 1.442695
        %v2238 = vpow.pop %v2237
        %v2239 = vmul.f32 %v2213, 1.442695
        %v2240 = vpow.pop %v2239
        %v2241 = vmul.f32 %v2214, 1.442695
        %v2242 = vpow.pop %v2241
        %v2243 = vmul.f32 %v2215, 1.442695
        %v2244 = vpow.pop %v2243
        %v2245 = vmul.f32 %v2216, 1.442695
        %v2246 = vpow.pop %v2245
        %v2247 = vmul.f32 %v2217, 1.442695
        %v2248 = vpow.pop %v2247
        %v2249 = vmul.f32 %v2218, 1.442695
        %v2250 = vpow.pop %v2249
        %v2251 = vsub.f32 %v1407, %v1916
        %v2252 = vsub.f32 %v1411, %v1918
        %v2253 = vsub.f32 %v1417, %v1920
        %v2254 = vsub.f32 %v1421, %v1922
        %v2255 = vsub.f32 %v1427, %v1924
        %v2256 = vsub.f32 %v1431, %v1926
        %v2257 = vsub.f32 %v1437, %v1928
        %v2258 = vsub.f32 %v1441, %v1930
        %v2259 = vsub.f32 %v1447, %v1932
        %v2260 = vsub.f32 %v1451, %v1934
        %v2261 = vsub.f32 %v1457, %v1936
        %v2262 = vsub.f32 %v1461, %v1938
        %v2263 = vsub.f32 %v1467, %v1940
        %v2264 = vsub.f32 %v1471, %v1942
        %v2265 = vsub.f32 %v1477, %v1944
        %v2266 = vsub.f32 %v1481, %v1946
        %v2267 = vmul.f32 %v2251, 1.442695
        %v2268 = vpow.pop %v2267
        %v2269 = vmul.f32 %v2252, 1.442695
        %v2270 = vpow.pop %v2269
        %v2271 = vmul.f32 %v2253, 1.442695
        %v2272 = vpow.pop %v2271
        %v2273 = vmul.f32 %v2254, 1.442695
        %v2274 = vpow.pop %v2273
        %v2275 = vmul.f32 %v2255, 1.442695
        %v2276 = vpow.pop %v2275
        %v2277 = vmul.f32 %v2256, 1.442695
        %v2278 = vpow.pop %v2277
        %v2279 = vmul.f32 %v2257, 1.442695
        %v2280 = vpow.pop %v2279
        %v2281 = vmul.f32 %v2258, 1.442695
        %v2282 = vpow.pop %v2281
        %v2283 = vmul.f32 %v2259, 1.442695
        %v2284 = vpow.pop %v2283
        %v2285 = vmul.f32 %v2260, 1.442695
        %v2286 = vpow.pop %v2285
        %v2287 = vmul.f32 %v2261, 1.442695
        %v2288 = vpow.pop %v2287
        %v2289 = vmul.f32 %v2262, 1.442695
        %v2290 = vpow.pop %v2289
        %v2291 = vmul.f32 %v2263, 1.442695
        %v2292 = vpow.pop %v2291
        %v2293 = vmul.f32 %v2264, 1.442695
        %v2294 = vpow.pop %v2293
        %v2295 = vmul.f32 %v2265, 1.442695
        %v2296 = vpow.pop %v2295
        %v2297 = vmul.f32 %v2266, 1.442695
        %v2298 = vpow.pop %v2297
        %2315 = vrot.lane.b32.xlu0 %v1980, 64
        %v2316 = vpop.permute.xlu0 %2315
        %2317 = vrot.lane.b32.xlu0 %v1982, 64
        %v2318 = vpop.permute.xlu0 %2317
        %2319 = vrot.lane.b32.xlu0 %v1984, 64
        %v2320 = vpop.permute.xlu0 %2319
        %2321 = vrot.lane.b32.xlu0 %v1986, 64
        %v2322 = vpop.permute.xlu0 %2321
        %2323 = vrot.lane.b32.xlu0 %v1988, 64
        %v2324 = vpop.permute.xlu0 %2323
        %2325 = vrot.lane.b32.xlu0 %v1990, 64
        %v2326 = vpop.permute.xlu0 %2325
        %2327 = vrot.lane.b32.xlu0 %v1992, 64
        %v2328 = vpop.permute.xlu0 %2327
        %2329 = vrot.lane.b32.xlu0 %v1994, 64
        %v2330 = vpop.permute.xlu0 %2329
        %2331 = vrot.lane.b32.xlu0 %v1996, 64
        %v2332 = vpop.permute.xlu0 %2331
        %2333 = vrot.lane.b32.xlu0 %v1998, 64
        %v2334 = vpop.permute.xlu0 %2333
        %2335 = vrot.lane.b32.xlu0 %v2000, 64
        %v2336 = vpop.permute.xlu0 %2335
        %2337 = vrot.lane.b32.xlu0 %v2002, 64
        %v2338 = vpop.permute.xlu0 %2337
        %2339 = vrot.lane.b32.xlu0 %v2004, 64
        %v2340 = vpop.permute.xlu0 %2339
        %2341 = vrot.lane.b32.xlu0 %v2006, 64
        %v2342 = vpop.permute.xlu0 %2341
        %2343 = vrot.lane.b32.xlu0 %v2008, 64
        %v2344 = vpop.permute.xlu0 %2343
        %2345 = vrot.lane.b32.xlu0 %v2010, 64
        %v2346 = vpop.permute.xlu0 %2345
        %v2363 = vadd.f32 %v1868, %v2316
        %v2364 = vadd.f32 %v1870, %v2318
        %v2365 = vadd.f32 %v1872, %v2320
        %v2366 = vadd.f32 %v1874, %v2322
        %v2367 = vadd.f32 %v1876, %v2324
        %v2368 = vadd.f32 %v1878, %v2326
        %v2369 = vadd.f32 %v1880, %v2328
        %v2370 = vadd.f32 %v1882, %v2330
        %v2371 = vadd.f32 %v1884, %v2332
        %v2372 = vadd.f32 %v1886, %v2334
        %v2373 = vadd.f32 %v1888, %v2336
        %v2374 = vadd.f32 %v1890, %v2338
        %v2375 = vadd.f32 %v1892, %v2340
        %v2376 = vadd.f32 %v1894, %v2342
        %v2377 = vadd.f32 %v1896, %v2344
        %v2378 = vadd.f32 %v1898, %v2346
        %v2379 = vadd.f32 %v2363, %v2028
        %v2380 = vadd.f32 %v2364, %v2030
        %v2381 = vadd.f32 %v2365, %v2032
        %v2382 = vadd.f32 %v2366, %v2034
        %v2383 = vadd.f32 %v2367, %v2036
        %v2384 = vadd.f32 %v2368, %v2038
        %v2385 = vadd.f32 %v2369, %v2040
        %v2386 = vadd.f32 %v2370, %v2042
        %v2387 = vadd.f32 %v2371, %v2044
        %v2388 = vadd.f32 %v2372, %v2046
        %v2389 = vadd.f32 %v2373, %v2048
        %v2390 = vadd.f32 %v2374, %v2050
        %v2391 = vadd.f32 %v2375, %v2052
        %v2392 = vadd.f32 %v2376, %v2054
        %v2393 = vadd.f32 %v2377, %v2056
        %v2394 = vadd.f32 %v2378, %v2058
        %2411 = vrot.lane.b32.xlu0 %v2076, 64
        %v2412 = vpop.permute.xlu0 %2411
        %2413 = vrot.lane.b32.xlu0 %v2078, 64
        %v2414 = vpop.permute.xlu0 %2413
        %2415 = vrot.lane.b32.xlu0 %v2080, 64
        %v2416 = vpop.permute.xlu0 %2415
        %2417 = vrot.lane.b32.xlu0 %v2082, 64
        %v2418 = vpop.permute.xlu0 %2417
        %2419 = vrot.lane.b32.xlu0 %v2084, 64
        %v2420 = vpop.permute.xlu0 %2419
        %2421 = vrot.lane.b32.xlu0 %v2086, 64
        %v2422 = vpop.permute.xlu0 %2421
        %2423 = vrot.lane.b32.xlu0 %v2088, 64
        %v2424 = vpop.permute.xlu0 %2423
        %2425 = vrot.lane.b32.xlu0 %v2090, 64
        %v2426 = vpop.permute.xlu0 %2425
        %2427 = vrot.lane.b32.xlu0 %v2092, 64
        %v2428 = vpop.permute.xlu0 %2427
        %2429 = vrot.lane.b32.xlu0 %v2094, 64
        %v2430 = vpop.permute.xlu0 %2429
        %2431 = vrot.lane.b32.xlu0 %v2096, 64
        %v2432 = vpop.permute.xlu0 %2431
        %2433 = vrot.lane.b32.xlu0 %v2098, 64
        %v2434 = vpop.permute.xlu0 %2433
        %2435 = vrot.lane.b32.xlu0 %v2100, 64
        %v2436 = vpop.permute.xlu0 %2435
        %2437 = vrot.lane.b32.xlu0 %v2102, 64
        %v2438 = vpop.permute.xlu0 %2437
        %2439 = vrot.lane.b32.xlu0 %v2104, 64
        %v2440 = vpop.permute.xlu0 %2439
        %2441 = vrot.lane.b32.xlu0 %v2106, 64
        %v2442 = vpop.permute.xlu0 %2441
        %v2459 = vadd.f32 %v2379, %v2412
        %v2460 = vadd.f32 %v2380, %v2414
        %v2461 = vadd.f32 %v2381, %v2416
        %v2462 = vadd.f32 %v2382, %v2418
        %v2463 = vadd.f32 %v2383, %v2420
        %v2464 = vadd.f32 %v2384, %v2422
        %v2465 = vadd.f32 %v2385, %v2424
        %v2466 = vadd.f32 %v2386, %v2426
        %v2467 = vadd.f32 %v2387, %v2428
        %v2468 = vadd.f32 %v2388, %v2430
        %v2469 = vadd.f32 %v2389, %v2432
        %v2470 = vadd.f32 %v2390, %v2434
        %v2471 = vadd.f32 %v2391, %v2436
        %v2472 = vadd.f32 %v2392, %v2438
        %v2473 = vadd.f32 %v2393, %v2440
        %v2474 = vadd.f32 %v2394, %v2442
        %v2475 = vadd.f32 %v2459, %v2124
        %v2476 = vadd.f32 %v2460, %v2126
        %v2477 = vadd.f32 %v2461, %v2128
        %v2478 = vadd.f32 %v2462, %v2130
        %v2479 = vadd.f32 %v2463, %v2132
        %v2480 = vadd.f32 %v2464, %v2134
        %v2481 = vadd.f32 %v2465, %v2136
        %v2482 = vadd.f32 %v2466, %v2138
        %v2483 = vadd.f32 %v2467, %v2140
        %v2484 = vadd.f32 %v2468, %v2142
        %v2485 = vadd.f32 %v2469, %v2144
        %v2486 = vadd.f32 %v2470, %v2146
        %v2487 = vadd.f32 %v2471, %v2148
        %v2488 = vadd.f32 %v2472, %v2150
        %v2489 = vadd.f32 %v2473, %v2152
        %v2490 = vadd.f32 %v2474, %v2154
        %2507 = vrot.lane.b32.xlu0 %v2172, 64
        %v2508 = vpop.permute.xlu0 %2507
        %2509 = vrot.lane.b32.xlu0 %v2174, 64
        %v2510 = vpop.permute.xlu0 %2509
        %2511 = vrot.lane.b32.xlu0 %v2176, 64
        %v2512 = vpop.permute.xlu0 %2511
        %2513 = vrot.lane.b32.xlu0 %v2178, 64
        %v2514 = vpop.permute.xlu0 %2513
        %2515 = vrot.lane.b32.xlu0 %v2180, 64
        %v2516 = vpop.permute.xlu0 %2515
        %2517 = vrot.lane.b32.xlu0 %v2182, 64
        %v2518 = vpop.permute.xlu0 %2517
        %2519 = vrot.lane.b32.xlu0 %v2184, 64
        %v2520 = vpop.permute.xlu0 %2519
        %2521 = vrot.lane.b32.xlu0 %v2186, 64
        %v2522 = vpop.permute.xlu0 %2521
        %2523 = vrot.lane.b32.xlu0 %v2188, 64
        %v2524 = vpop.permute.xlu0 %2523
        %2525 = vrot.lane.b32.xlu0 %v2190, 64
        %v2526 = vpop.permute.xlu0 %2525
        %2527 = vrot.lane.b32.xlu0 %v2192, 64
        %v2528 = vpop.permute.xlu0 %2527
        %2529 = vrot.lane.b32.xlu0 %v2194, 64
        %v2530 = vpop.permute.xlu0 %2529
        %2531 = vrot.lane.b32.xlu0 %v2196, 64
        %v2532 = vpop.permute.xlu0 %2531
        %2533 = vrot.lane.b32.xlu0 %v2198, 64
        %v2534 = vpop.permute.xlu0 %2533
        %2535 = vrot.lane.b32.xlu0 %v2200, 64
        %v2536 = vpop.permute.xlu0 %2535
        %2537 = vrot.lane.b32.xlu0 %v2202, 64
        %v2538 = vpop.permute.xlu0 %2537
        %v2555 = vadd.f32 %v2475, %v2508
        %v2556 = vadd.f32 %v2476, %v2510
        %v2557 = vadd.f32 %v2477, %v2512
        %v2558 = vadd.f32 %v2478, %v2514
        %v2559 = vadd.f32 %v2479, %v2516
        %v2560 = vadd.f32 %v2480, %v2518
        %v2561 = vadd.f32 %v2481, %v2520
        %v2562 = vadd.f32 %v2482, %v2522
        %v2563 = vadd.f32 %v2483, %v2524
        %v2564 = vadd.f32 %v2484, %v2526
        %v2565 = vadd.f32 %v2485, %v2528
        %v2566 = vadd.f32 %v2486, %v2530
        %v2567 = vadd.f32 %v2487, %v2532
        %v2568 = vadd.f32 %v2488, %v2534
        %v2569 = vadd.f32 %v2489, %v2536
        %v2570 = vadd.f32 %v2490, %v2538
        %v2571 = vadd.f32 %v2555, %v2220
        %v2572 = vadd.f32 %v2556, %v2222
        %v2573 = vadd.f32 %v2557, %v2224
        %v2574 = vadd.f32 %v2558, %v2226
        %v2575 = vadd.f32 %v2559, %v2228
        %v2576 = vadd.f32 %v2560, %v2230
        %v2577 = vadd.f32 %v2561, %v2232
        %v2578 = vadd.f32 %v2562, %v2234
        %v2579 = vadd.f32 %v2563, %v2236
        %v2580 = vadd.f32 %v2564, %v2238
        %v2581 = vadd.f32 %v2565, %v2240
        %v2582 = vadd.f32 %v2566, %v2242
        %v2583 = vadd.f32 %v2567, %v2244
        %v2584 = vadd.f32 %v2568, %v2246
        %v2585 = vadd.f32 %v2569, %v2248
        %v2586 = vadd.f32 %v2570, %v2250
        %2603 = vrot.lane.b32.xlu0 %v2268, 64
        %v2604 = vpop.permute.xlu0 %2603
        %2605 = vrot.lane.b32.xlu0 %v2270, 64
        %v2606 = vpop.permute.xlu0 %2605
        %2607 = vrot.lane.b32.xlu0 %v2272, 64
        %v2608 = vpop.permute.xlu0 %2607
        %2609 = vrot.lane.b32.xlu0 %v2274, 64
        %v2610 = vpop.permute.xlu0 %2609
        %2611 = vrot.lane.b32.xlu0 %v2276, 64
        %v2612 = vpop.permute.xlu0 %2611
        %2613 = vrot.lane.b32.xlu0 %v2278, 64
        %v2614 = vpop.permute.xlu0 %2613
        %2615 = vrot.lane.b32.xlu0 %v2280, 64
        %v2616 = vpop.permute.xlu0 %2615
        %2617 = vrot.lane.b32.xlu0 %v2282, 64
        %v2618 = vpop.permute.xlu0 %2617
        %2619 = vrot.lane.b32.xlu0 %v2284, 64
        %v2620 = vpop.permute.xlu0 %2619
        %2621 = vrot.lane.b32.xlu0 %v2286, 64
        %v2622 = vpop.permute.xlu0 %2621
        %2623 = vrot.lane.b32.xlu0 %v2288, 64
        %v2624 = vpop.permute.xlu0 %2623
        %2625 = vrot.lane.b32.xlu0 %v2290, 64
        %v2626 = vpop.permute.xlu0 %2625
        %2627 = vrot.lane.b32.xlu0 %v2292, 64
        %v2628 = vpop.permute.xlu0 %2627
        %2629 = vrot.lane.b32.xlu0 %v2294, 64
        %v2630 = vpop.permute.xlu0 %2629
        %2631 = vrot.lane.b32.xlu0 %v2296, 64
        %v2632 = vpop.permute.xlu0 %2631
        %2633 = vrot.lane.b32.xlu0 %v2298, 64
        %v2634 = vpop.permute.xlu0 %2633
        %v2651 = vadd.f32 %v2571, %v2604
        %v2652 = vadd.f32 %v2572, %v2606
        %v2653 = vadd.f32 %v2573, %v2608
        %v2654 = vadd.f32 %v2574, %v2610
        %v2655 = vadd.f32 %v2575, %v2612
        %v2656 = vadd.f32 %v2576, %v2614
        %v2657 = vadd.f32 %v2577, %v2616
        %v2658 = vadd.f32 %v2578, %v2618
        %v2659 = vadd.f32 %v2579, %v2620
        %v2660 = vadd.f32 %v2580, %v2622
        %v2661 = vadd.f32 %v2581, %v2624
        %v2662 = vadd.f32 %v2582, %v2626
        %v2663 = vadd.f32 %v2583, %v2628
        %v2664 = vadd.f32 %v2584, %v2630
        %v2665 = vadd.f32 %v2585, %v2632
        %v2666 = vadd.f32 %v2586, %v2634
        %v2667 = vrcp.pop %v2651
        %v2668 = vmul.f32 1.0, %v2667
        %v2669 = vrcp.pop %v2652
        %v2670 = vmul.f32 1.0, %v2669
        %v2671 = vrcp.pop %v2653
        %v2672 = vmul.f32 1.0, %v2671
        %v2673 = vrcp.pop %v2654
        %v2674 = vmul.f32 1.0, %v2673
        %v2675 = vrcp.pop %v2655
        %v2676 = vmul.f32 1.0, %v2675
        %v2677 = vrcp.pop %v2656
        %v2678 = vmul.f32 1.0, %v2677
        %v2679 = vrcp.pop %v2657
        %v2680 = vmul.f32 1.0, %v2679
        %v2681 = vrcp.pop %v2658
        %v2682 = vmul.f32 1.0, %v2681
        %v2683 = vrcp.pop %v2659
        %v2684 = vmul.f32 1.0, %v2683
        %v2685 = vrcp.pop %v2660
        %v2686 = vmul.f32 1.0, %v2685
        %v2687 = vrcp.pop %v2661
        %v2688 = vmul.f32 1.0, %v2687
        %v2689 = vrcp.pop %v2662
        %v2690 = vmul.f32 1.0, %v2689
        %v2691 = vrcp.pop %v2663
        %v2692 = vmul.f32 1.0, %v2691
        %v2693 = vrcp.pop %v2664
        %v2694 = vmul.f32 1.0, %v2693
        %v2695 = vrcp.pop %v2665
        %v2696 = vmul.f32 1.0, %v2695
        %v2697 = vrcp.pop %v2666
        %v2698 = vmul.f32 1.0, %v2697
        %v2699 = vmul.f32 %v1868, %v2668
        %v2700 = vmul.f32 %v1870, %v2670
        %v2701 = vmul.f32 %v1872, %v2672
        %v2702 = vmul.f32 %v1874, %v2674
        %v2703 = vmul.f32 %v1876, %v2676
        %v2704 = vmul.f32 %v1878, %v2678
        %v2705 = vmul.f32 %v1880, %v2680
        %v2706 = vmul.f32 %v1882, %v2682
        %v2707 = vmul.f32 %v1884, %v2684
        %v2708 = vmul.f32 %v1886, %v2686
        %v2709 = vmul.f32 %v1888, %v2688
        %v2710 = vmul.f32 %v1890, %v2690
        %v2711 = vmul.f32 %v1892, %v2692
        %v2712 = vmul.f32 %v1894, %v2694
        %v2713 = vmul.f32 %v1896, %v2696
        %v2714 = vmul.f32 %v1898, %v2698
        %2731 = vrot.lane.b32.xlu0 %v2668, 64
        %v2732 = vpop.permute.xlu0 %2731
        %2733 = vrot.lane.b32.xlu0 %v2670, 64
        %v2734 = vpop.permute.xlu0 %2733
        %2735 = vrot.lane.b32.xlu0 %v2672, 64
        %v2736 = vpop.permute.xlu0 %2735
        %2737 = vrot.lane.b32.xlu0 %v2674, 64
        %v2738 = vpop.permute.xlu0 %2737
        %2739 = vrot.lane.b32.xlu0 %v2676, 64
        %v2740 = vpop.permute.xlu0 %2739
        %2741 = vrot.lane.b32.xlu0 %v2678, 64
        %v2742 = vpop.permute.xlu0 %2741
        %2743 = vrot.lane.b32.xlu0 %v2680, 64
        %v2744 = vpop.permute.xlu0 %2743
        %2745 = vrot.lane.b32.xlu0 %v2682, 64
        %v2746 = vpop.permute.xlu0 %2745
        %2747 = vrot.lane.b32.xlu0 %v2684, 64
        %v2748 = vpop.permute.xlu0 %2747
        %2749 = vrot.lane.b32.xlu0 %v2686, 64
        %v2750 = vpop.permute.xlu0 %2749
        %2751 = vrot.lane.b32.xlu0 %v2688, 64
        %v2752 = vpop.permute.xlu0 %2751
        %2753 = vrot.lane.b32.xlu0 %v2690, 64
        %v2754 = vpop.permute.xlu0 %2753
        %2755 = vrot.lane.b32.xlu0 %v2692, 64
        %v2756 = vpop.permute.xlu0 %2755
        %2757 = vrot.lane.b32.xlu0 %v2694, 64
        %v2758 = vpop.permute.xlu0 %2757
        %2759 = vrot.lane.b32.xlu0 %v2696, 64
        %v2760 = vpop.permute.xlu0 %2759
        %2761 = vrot.lane.b32.xlu0 %v2698, 64
        %v2762 = vpop.permute.xlu0 %2761
        %v2779 = vmul.f32 %v1980, %v2732
        %v2780 = vmul.f32 %v1982, %v2734
        %v2781 = vmul.f32 %v1984, %v2736
        %v2782 = vmul.f32 %v1986, %v2738
        %v2783 = vmul.f32 %v1988, %v2740
        %v2784 = vmul.f32 %v1990, %v2742
        %v2785 = vmul.f32 %v1992, %v2744
        %v2786 = vmul.f32 %v1994, %v2746
        %v2787 = vmul.f32 %v1996, %v2748
        %v2788 = vmul.f32 %v1998, %v2750
        %v2789 = vmul.f32 %v2000, %v2752
        %v2790 = vmul.f32 %v2002, %v2754
        %v2791 = vmul.f32 %v2004, %v2756
        %v2792 = vmul.f32 %v2006, %v2758
        %v2793 = vmul.f32 %v2008, %v2760
        %v2794 = vmul.f32 %v2010, %v2762
        %v2795 = vmul.f32 %v2028, %v2668
        %v2796 = vmul.f32 %v2030, %v2670
        %v2797 = vmul.f32 %v2032, %v2672
        %v2798 = vmul.f32 %v2034, %v2674
        %v2799 = vmul.f32 %v2036, %v2676
        %v2800 = vmul.f32 %v2038, %v2678
        %v2801 = vmul.f32 %v2040, %v2680
        %v2802 = vmul.f32 %v2042, %v2682
        %v2803 = vmul.f32 %v2044, %v2684
        %v2804 = vmul.f32 %v2046, %v2686
        %v2805 = vmul.f32 %v2048, %v2688
        %v2806 = vmul.f32 %v2050, %v2690
        %v2807 = vmul.f32 %v2052, %v2692
        %v2808 = vmul.f32 %v2054, %v2694
        %v2809 = vmul.f32 %v2056, %v2696
        %v2810 = vmul.f32 %v2058, %v2698
        %v2811 = vmul.f32 %v2076, %v2732
        %v2812 = vmul.f32 %v2078, %v2734
        %v2813 = vmul.f32 %v2080, %v2736
        %v2814 = vmul.f32 %v2082, %v2738
        %v2815 = vmul.f32 %v2084, %v2740
        %v2816 = vmul.f32 %v2086, %v2742
        %v2817 = vmul.f32 %v2088, %v2744
        %v2818 = vmul.f32 %v2090, %v2746
        %v2819 = vmul.f32 %v2092, %v2748
        %v2820 = vmul.f32 %v2094, %v2750
        %v2821 = vmul.f32 %v2096, %v2752
        %v2822 = vmul.f32 %v2098, %v2754
        %v2823 = vmul.f32 %v2100, %v2756
        %v2824 = vmul.f32 %v2102, %v2758
        %v2825 = vmul.f32 %v2104, %v2760
        %v2826 = vmul.f32 %v2106, %v2762
        %v2827 = vmul.f32 %v2124, %v2668
        %v2828 = vmul.f32 %v2126, %v2670
        %v2829 = vmul.f32 %v2128, %v2672
        %v2830 = vmul.f32 %v2130, %v2674
        %v2831 = vmul.f32 %v2132, %v2676
        %v2832 = vmul.f32 %v2134, %v2678
        %v2833 = vmul.f32 %v2136, %v2680
        %v2834 = vmul.f32 %v2138, %v2682
        %v2835 = vmul.f32 %v2140, %v2684
        %v2836 = vmul.f32 %v2142, %v2686
        %v2837 = vmul.f32 %v2144, %v2688
        %v2838 = vmul.f32 %v2146, %v2690
        %v2839 = vmul.f32 %v2148, %v2692
        %v2840 = vmul.f32 %v2150, %v2694
        %v2841 = vmul.f32 %v2152, %v2696
        %v2842 = vmul.f32 %v2154, %v2698
        %v2843 = vmul.f32 %v2172, %v2732
        %v2844 = vmul.f32 %v2174, %v2734
        %v2845 = vmul.f32 %v2176, %v2736
        %v2846 = vmul.f32 %v2178, %v2738
        %v2847 = vmul.f32 %v2180, %v2740
        %v2848 = vmul.f32 %v2182, %v2742
        %v2849 = vmul.f32 %v2184, %v2744
        %v2850 = vmul.f32 %v2186, %v2746
        %v2851 = vmul.f32 %v2188, %v2748
        %v2852 = vmul.f32 %v2190, %v2750
        %v2853 = vmul.f32 %v2192, %v2752
        %v2854 = vmul.f32 %v2194, %v2754
        %v2855 = vmul.f32 %v2196, %v2756
        %v2856 = vmul.f32 %v2198, %v2758
        %v2857 = vmul.f32 %v2200, %v2760
        %v2858 = vmul.f32 %v2202, %v2762
        %v2859 = vmul.f32 %v2220, %v2668
        %v2860 = vmul.f32 %v2222, %v2670
        %v2861 = vmul.f32 %v2224, %v2672
        %v2862 = vmul.f32 %v2226, %v2674
        %v2863 = vmul.f32 %v2228, %v2676
        %v2864 = vmul.f32 %v2230, %v2678
        %v2865 = vmul.f32 %v2232, %v2680
        %v2866 = vmul.f32 %v2234, %v2682
        %v2867 = vmul.f32 %v2236, %v2684
        %v2868 = vmul.f32 %v2238, %v2686
        %v2869 = vmul.f32 %v2240, %v2688
        %v2870 = vmul.f32 %v2242, %v2690
        %v2871 = vmul.f32 %v2244, %v2692
        %v2872 = vmul.f32 %v2246, %v2694
        %v2873 = vmul.f32 %v2248, %v2696
        %v2874 = vmul.f32 %v2250, %v2698
        %v2875 = vmul.f32 %v2268, %v2732
        %v2876 = vmul.f32 %v2270, %v2734
        %v2877 = vmul.f32 %v2272, %v2736
        %v2878 = vmul.f32 %v2274, %v2738
        %v2879 = vmul.f32 %v2276, %v2740
        %v2880 = vmul.f32 %v2278, %v2742
        %v2881 = vmul.f32 %v2280, %v2744
        %v2882 = vmul.f32 %v2282, %v2746
        %v2883 = vmul.f32 %v2284, %v2748
        %v2884 = vmul.f32 %v2286, %v2750
        %v2885 = vmul.f32 %v2288, %v2752
        %v2886 = vmul.f32 %v2290, %v2754
        %v2887 = vmul.f32 %v2292, %v2756
        %v2888 = vmul.f32 %v2294, %v2758
        %v2889 = vmul.f32 %v2296, %v2760
        %v2890 = vmul.f32 %v2298, %v2762
        %v2891 = vsel %vm479, %v2699, %v2779
        %v2892 = vsel %vm479, %v2700, %v2780
        %v2893 = vsel %vm479, %v2701, %v2781
        %v2894 = vsel %vm479, %v2702, %v2782
        %v2895 = vsel %vm479, %v2703, %v2783
        %v2896 = vsel %vm479, %v2704, %v2784
        %v2897 = vsel %vm479, %v2705, %v2785
        %v2898 = vsel %vm479, %v2706, %v2786
        %v2899 = vsel %vm479, %v2707, %v2787
        %v2900 = vsel %vm479, %v2708, %v2788
        %v2901 = vsel %vm479, %v2709, %v2789
        %v2902 = vsel %vm479, %v2710, %v2790
        %v2903 = vsel %vm479, %v2711, %v2791
        %v2904 = vsel %vm479, %v2712, %v2792
        %v2905 = vsel %vm479, %v2713, %v2793
        %v2906 = vsel %vm479, %v2714, %v2794
        %v2907 = vsel %vm479, %v2795, %v2811
        %v2908 = vsel %vm479, %v2796, %v2812
        %v2909 = vsel %vm479, %v2797, %v2813
        %v2910 = vsel %vm479, %v2798, %v2814
        %v2911 = vsel %vm479, %v2799, %v2815
        %v2912 = vsel %vm479, %v2800, %v2816
        %v2913 = vsel %vm479, %v2801, %v2817
        %v2914 = vsel %vm479, %v2802, %v2818
        %v2915 = vsel %vm479, %v2803, %v2819
        %v2916 = vsel %vm479, %v2804, %v2820
        %v2917 = vsel %vm479, %v2805, %v2821
        %v2918 = vsel %vm479, %v2806, %v2822
        %v2919 = vsel %vm479, %v2807, %v2823
        %v2920 = vsel %vm479, %v2808, %v2824
        %v2921 = vsel %vm479, %v2809, %v2825
        %v2922 = vsel %vm479, %v2810, %v2826
        %v2923 = vsel %vm479, %v2827, %v2843
        %v2924 = vsel %vm479, %v2828, %v2844
        %v2925 = vsel %vm479, %v2829, %v2845
        %v2926 = vsel %vm479, %v2830, %v2846
        %v2927 = vsel %vm479, %v2831, %v2847
        %v2928 = vsel %vm479, %v2832, %v2848
        %v2929 = vsel %vm479, %v2833, %v2849
        %v2930 = vsel %vm479, %v2834, %v2850
        %v2931 = vsel %vm479, %v2835, %v2851
        %v2932 = vsel %vm479, %v2836, %v2852
        %v2933 = vsel %vm479, %v2837, %v2853
        %v2934 = vsel %vm479, %v2838, %v2854
        %v2935 = vsel %vm479, %v2839, %v2855
        %v2936 = vsel %vm479, %v2840, %v2856
        %v2937 = vsel %vm479, %v2841, %v2857
        %v2938 = vsel %vm479, %v2842, %v2858
        %v2939 = vsel %vm479, %v2859, %v2875
        %v2940 = vsel %vm479, %v2860, %v2876
        %v2941 = vsel %vm479, %v2861, %v2877
        %v2942 = vsel %vm479, %v2862, %v2878
        %v2943 = vsel %vm479, %v2863, %v2879
        %v2944 = vsel %vm479, %v2864, %v2880
        %v2945 = vsel %vm479, %v2865, %v2881
        %v2946 = vsel %vm479, %v2866, %v2882
        %v2947 = vsel %vm479, %v2867, %v2883
        %v2948 = vsel %vm479, %v2868, %v2884
        %v2949 = vsel %vm479, %v2869, %v2885
        %v2950 = vsel %vm479, %v2870, %v2886
        %v2951 = vsel %vm479, %v2871, %v2887
        %v2952 = vsel %vm479, %v2872, %v2888
        %v2953 = vsel %vm479, %v2873, %v2889
        %v2954 = vsel %vm479, %v2874, %v2890
        %2955 = vst [vmem:[%s369] sm:$0xff] %v2891
        %2956 = vst [vmem:[%s369 + $0x8] sm:$0xff] %v2907
        %2957 = vst [vmem:[%s369 + $0x10] sm:$0xff] %v2923
        %2958 = vst [vmem:[%s369 + $0x18] sm:$0xff] %v2939
        %2959 = vst [vmem:[%s369 + $0x20] sm:$0xff] %v2892
        %2960 = vst [vmem:[%s369 + $0x28] sm:$0xff] %v2908
        %2961 = vst [vmem:[%s369 + $0x30] sm:$0xff] %v2924
        %2962 = vst [vmem:[%s369 + $0x38] sm:$0xff] %v2940
        %2963 = vst [vmem:[%s369 + $0x40] sm:$0xff] %v2893
        %2964 = vst [vmem:[%s369 + $0x48] sm:$0xff] %v2909
        %2965 = vst [vmem:[%s369 + $0x50] sm:$0xff] %v2925
        %2966 = vst [vmem:[%s369 + $0x58] sm:$0xff] %v2941
        %2967 = vst [vmem:[%s369 + $0x60] sm:$0xff] %v2894
        %2968 = vst [vmem:[%s369 + $0x68] sm:$0xff] %v2910
        %2969 = vst [vmem:[%s369 + $0x70] sm:$0xff] %v2926
        %2970 = vst [vmem:[%s369 + $0x78] sm:$0xff] %v2942
        %2971 = vst [vmem:[%s369 + $0x80] sm:$0xff] %v2895
        %2972 = vst [vmem:[%s369 + $0x88] sm:$0xff] %v2911
        %2973 = vst [vmem:[%s369 + $0x90] sm:$0xff] %v2927
        %2974 = vst [vmem:[%s369 + $0x98] sm:$0xff] %v2943
        %2975 = vst [vmem:[%s369 + $0xa0] sm:$0xff] %v2896
        %2976 = vst [vmem:[%s369 + $0xa8] sm:$0xff] %v2912
        %2977 = vst [vmem:[%s369 + $0xb0] sm:$0xff] %v2928
        %2978 = vst [vmem:[%s369 + $0xb8] sm:$0xff] %v2944
        %2979 = vst [vmem:[%s369 + $0xc0] sm:$0xff] %v2897
        %2980 = vst [vmem:[%s369 + $0xc8] sm:$0xff] %v2913
        %2981 = vst [vmem:[%s369 + $0xd0] sm:$0xff] %v2929
        %2982 = vst [vmem:[%s369 + $0xd8] sm:$0xff] %v2945
        %2983 = vst [vmem:[%s369 + $0xe0] sm:$0xff] %v2898
        %2984 = vst [vmem:[%s369 + $0xe8] sm:$0xff] %v2914
        %2985 = vst [vmem:[%s369 + $0xf0] sm:$0xff] %v2930
        %2986 = vst [vmem:[%s369 + $0xf8] sm:$0xff] %v2946
        %2987 = vst [vmem:[%s369 + $0x100] sm:$0xff] %v2899
        %2988 = vst [vmem:[%s369 + $0x108] sm:$0xff] %v2915
        %2989 = vst [vmem:[%s369 + $0x110] sm:$0xff] %v2931
        %2990 = vst [vmem:[%s369 + $0x118] sm:$0xff] %v2947
        %2991 = vst [vmem:[%s369 + $0x120] sm:$0xff] %v2900
        %2992 = vst [vmem:[%s369 + $0x128] sm:$0xff] %v2916
        %2993 = vst [vmem:[%s369 + $0x130] sm:$0xff] %v2932
        %2994 = vst [vmem:[%s369 + $0x138] sm:$0xff] %v2948
        %2995 = vst [vmem:[%s369 + $0x140] sm:$0xff] %v2901
        %2996 = vst [vmem:[%s369 + $0x148] sm:$0xff] %v2917
        %2997 = vst [vmem:[%s369 + $0x150] sm:$0xff] %v2933
        %2998 = vst [vmem:[%s369 + $0x158] sm:$0xff] %v2949
        %2999 = vst [vmem:[%s369 + $0x160] sm:$0xff] %v2902
        %3000 = vst [vmem:[%s369 + $0x168] sm:$0xff] %v2918
        %3001 = vst [vmem:[%s369 + $0x170] sm:$0xff] %v2934
        %3002 = vst [vmem:[%s369 + $0x178] sm:$0xff] %v2950
        %3003 = vst [vmem:[%s369 + $0x180] sm:$0xff] %v2903
        %3004 = vst [vmem:[%s369 + $0x188] sm:$0xff] %v2919
        %3005 = vst [vmem:[%s369 + $0x190] sm:$0xff] %v2935
        %3006 = vst [vmem:[%s369 + $0x198] sm:$0xff] %v2951
        %3007 = vst [vmem:[%s369 + $0x1a0] sm:$0xff] %v2904
        %3008 = vst [vmem:[%s369 + $0x1a8] sm:$0xff] %v2920
        %3009 = vst [vmem:[%s369 + $0x1b0] sm:$0xff] %v2936
        %3010 = vst [vmem:[%s369 + $0x1b8] sm:$0xff] %v2952
        %3011 = vst [vmem:[%s369 + $0x1c0] sm:$0xff] %v2905
        %3012 = vst [vmem:[%s369 + $0x1c8] sm:$0xff] %v2921
        %3013 = vst [vmem:[%s369 + $0x1d0] sm:$0xff] %v2937
        %3014 = vst [vmem:[%s369 + $0x1d8] sm:$0xff] %v2953
        %3015 = vst [vmem:[%s369 + $0x1e0] sm:$0xff] %v2906
        %3016 = vst [vmem:[%s369 + $0x1e8] sm:$0xff] %v2922
        %3017 = vst [vmem:[%s369 + $0x1f0] sm:$0xff] %v2938
        %3018 = vst [vmem:[%s369 + $0x1f8] sm:$0xff] %v2954
        %s3019 = sand.u32 %s252, 1
        %s3020 = scalar_lea.sflag [#allocation3], %s3019
        %s3021 = sand.u32 %s252, 1
        %s3022 = smul.addr %s3021, 512
        %s3023 = scalar_lea.vmem [#allocation2], %s3022
        // Predicated region
        $region61: #{tpu_custom_call.1} parent=59 // pred_check
          %p3024 = pneg %p262
        $region62: #{tpu_custom_call.1} parent=59 // pred_check_branch
          %3026 = sbr.rel (%p3024) target = $region64
        $region63: #{tpu_custom_call.1} parent=59 // pred_region
          %s3027 = smul.u32 16, %s24
          %s3029 = ssub.s32 8192, 8192
          %3030 = vsyncadd %s3020, %s3029
          %s3031 = smul.addr %s3027, 4
          %s3032 = smul.addr %s3031, 128
          %s3033 = scalar_lea.hbm %s10, %s3032
          %s3034 = sshll.u32 %s3023, 4
          %s3035 = int_to_ptr.vmem [resolvable:$true] %s3034
          %3040 = dma.vmem_to_hbm [thread:$0]  %s3035, 8192, %s3033, %s3020, 512, 512, 32
        $region64: #{tpu_custom_call.1} parent=59 // pred_fallthru
          _
      $region60: #{tpu_custom_call.1} parent=5 // pred_fallthru
        _
      %p3041 = scmp.le.s32.totalorder 2, %s19
      // Predicated region
      $region65: #{tpu_custom_call.1} parent=5 // pred_check
        %p3042 = pneg %p3041
      $region66: #{tpu_custom_call.1} parent=5 // pred_check_branch
        %3044 = sbr.rel (%p3042) target = $region68
      $region67: #{tpu_custom_call.1} parent=5 // pred_region
        %s3045 = ssub.s32 %s19, 2
        // Predicated region
        $region69: #{tpu_custom_call.1} parent=67 // pred_check
          %p3046 = pneg %p268
        $region70: #{tpu_custom_call.1} parent=67 // pred_check_branch
          %3048 = sbr.rel (%p3046) target = $region72
        $region71: #{tpu_custom_call.1} parent=67 // pred_region
          %s3049 = sand.u32 %s253, 1
          %s3050 = scalar_lea.sflag [#allocation3], %s3049
          %s3051 = sand.u32 %s253, 1
          %s3052 = smul.addr %s3051, 512
          %s3053 = scalar_lea.vmem [#allocation2], %s3052
          %3054 = dma.done %s3050, 8192
        $region72: #{tpu_custom_call.1} parent=67 // pred_fallthru
          _
      $region68: #{tpu_custom_call.1} parent=5 // pred_fallthru
        _
    $region6: #{tpu_custom_call.1} parent=1 // loop_footer
      %s23 = sadd.s32 1, %s19
    $region7: #{tpu_custom_call.1} parent=1 // loop_footer_branch
      %18 = sbr.rel target = $region3
    $region8: #{tpu_custom_call.1} parent=1 // loop_exit
      _
    %3055 = vsyncpa [#allocation3], 1
    %s3056 = scalar_lea.sflag [#allocation3], 1
    %3057 = vsyncpa %s3056, 1

</llo_original>
